<compile_context>
chip_gen: v5e
topology: v5e:2x2
jax: 0.10.0
libtpu: 0.0.40
codegen_flags: <defaults>
</compile_context>

<pallas_src>
import jax
import jax.numpy as jnp
from jax.experimental import pallas as pl
from jax.experimental.pallas import tpu as pltpu

EPS = 1e-5


def _round_up(x, k):
    return (x + k - 1) // k * k


def _pick_m_tile(m_pad):
    """Lane-dense spatial tile (multiple of 128) that divides m_pad; prefer >=2 grid steps."""
    for cand in (1024, 512, 256, 128):
        if m_pad % cand == 0 and m_pad // cand >= 2:
            return cand
    return m_pad


# --------------------------------------------------------------------------- #
# Pallas kernels
# --------------------------------------------------------------------------- #
def conv_stats_kernel(xc_ref, w_ref, y_ref, s_ref, q_ref):
    """3x3x3 conv block as a single MXU matmul + training-BN batch statistics.

    xc_ref : (1, Kp, MT)    bf16  im2col columns (Kp = 27*Cin zero-padded to mult. of 128)
    w_ref  : (Cout, Kp)     bf16  folded conv weights
    y_ref  : (1, Cout, MT)  f32   conv output block (lane-dense, MT % 128 == 0)
    s_ref  : (1, Cout, 128) f32   per-batch running sum     (revisited across M-tile axis)
    q_ref  : (1, Cout, 128) f32   per-batch running sum-sq  (revisited across M-tile axis)
    """
    # One matmul, contraction K = 27*Cin (bf16 operands, f32 accumulation on the MXU).
    y = jnp.dot(w_ref[...], xc_ref[0], preferred_element_type=jnp.float32)  # (Cout, MT)
    y_ref[0] = y

    @pl.when(pl.program_id(1) == 0)
    def _init():
        s_ref[...] = jnp.zeros_like(s_ref)
        q_ref[...] = jnp.zeros_like(q_ref)

    ps = jnp.sum(y, axis=1, keepdims=True)        # (Cout, 1) lane reduce (XLU)
    pq = jnp.sum(y * y, axis=1, keepdims=True)
    s_ref[0] += jnp.broadcast_to(ps, s_ref.shape[1:])
    q_ref[0] += jnp.broadcast_to(pq, q_ref.shape[1:])


def bn_relu_kernel(y_ref, scale_ref, shift_ref, o_ref):
    """Fused BatchNorm (folded per-channel scale/shift) + ReLU, lane-dense blocks."""
    o_ref[0] = jnp.maximum(y_ref[0] * scale_ref[...] + shift_ref[...], 0.0)


# --------------------------------------------------------------------------- #
# Host-side glue
# --------------------------------------------------------------------------- #
def _im2col_3x3x3(x):
    """(N, C, D, H, W) -> (N, 27*C, D*H*W) columns, tap-major / channel-minor order."""
    n, c, d, h, w = x.shape
    xp = jnp.pad(x, ((0, 0), (0, 0), (1, 1), (1, 1), (1, 1)))
    cols = []
    for kd in range(3):
        for kh in range(3):
            for kw in range(3):
                cols.append(xp[:, :, kd:kd + d, kh:kh + h, kw:kw + w]
                            .reshape(n, c, d * h * w))
    # TODO(synk): replace this 27x host-side tap materialization with in-kernel halo
    # loads (memory_space=pl.ANY + manual DMA) and shifted slices to cut HBM traffic.
    return jnp.concatenate(cols, axis=1)


def _conv_bn_relu(x, w, gamma, beta):
    """One Conv3d(3x3x3, pad 1; bias omitted as a BN no-op) + BN3d(train) + ReLU stage.

    x : (N, Cin, D, H, W) f32,  w : (Cout, Cin, 3, 3, 3) (PyTorch layout)
    """
    n, cin, d, h, wdim = x.shape
    cout = w.shape[0]
    m = d * h * wdim
    m_pad = _round_up(m, 128)
    mt = _pick_m_tile(m_pad)
    nmt = m_pad // mt
    k = 27 * cin
    kp = _round_up(k, 128)        # zero-padding the contraction dim is exact & tile-aligned

    xcol = _im2col_3x3x3(x)                                            # (n, k, m) f32
    xcol = jnp.pad(xcol, ((0, 0), (0, kp - k), (0, m_pad - m)))
    xcol = xcol.astype(jnp.bfloat16)                                   # bf16 MXU operands
    wk = jnp.transpose(w, (0, 2, 3, 4, 1)).reshape(cout, k)            # [co, kd*9+kh*3+kw, ci]
    wk = jnp.pad(wk, ((0, 0), (0, kp - k))).astype(jnp.bfloat16)

    y, s, q = pl.pallas_call(
        conv_stats_kernel,
        out_shape=(
            jax.ShapeDtypeStruct((n, cout, m_pad), jnp.float32),
            jax.ShapeDtypeStruct((n, cout, 128), jnp.float32),
            jax.ShapeDtypeStruct((n, cout, 128), jnp.float32),
        ),
        grid_spec=pltpu.PrefetchScalarGridSpec(
            num_scalar_prefetch=0,
            grid=(n, nmt),
            in_specs=[
                pl.BlockSpec((1, kp, mt), lambda i, j: (i, 0, j)),
                pl.BlockSpec((cout, kp), lambda i, j: (0, 0)),
            ],
            out_specs=[
                pl.BlockSpec((1, cout, mt), lambda i, j: (i, 0, j)),
                pl.BlockSpec((1, cout, 128), lambda i, j: (i, 0, 0)),
                pl.BlockSpec((1, cout, 128), lambda i, j: (i, 0, 0)),
            ],
        ),
        compiler_params=pltpu.CompilerParams(
            # Batch axis "parallel" (stats blocks are per-batch -> megacore-safe on v7x),
            # M-tile axis "arbitrary" (stats accumulate across it).
            dimension_semantics=("parallel", "arbitrary"),
            vmem_limit_bytes=32 * 1024 * 1024,
        ),
    )(xcol, wk)

    # Fold training-mode batch statistics into a per-channel affine (padded columns are
    # all-zero and the bias is dropped, so they contribute exactly 0 to both sums).
    count = n * m
    s_tot = jnp.sum(s[:, :, 0], axis=0)
    q_tot = jnp.sum(q[:, :, 0], axis=0)
    mean = s_tot / count
    var = q_tot / count - mean * mean            # biased variance, as PyTorch BN uses
    scale = gamma * jax.lax.rsqrt(var + EPS)
    shift = beta - mean * scale

    out = pl.pallas_call(
        bn_relu_kernel,
        out_shape=jax.ShapeDtypeStruct((n, cout, m_pad), jnp.float32),
        grid_spec=pltpu.PrefetchScalarGridSpec(
            num_scalar_prefetch=0,
            grid=(n, nmt),
            in_specs=[
                pl.BlockSpec((1, cout, mt), lambda i, j: (i, 0, j)),
                pl.BlockSpec((cout, 1), lambda i, j: (0, 0)),
                pl.BlockSpec((cout, 1), lambda i, j: (0, 0)),
            ],
            out_specs=pl.BlockSpec((1, cout, mt), lambda i, j: (i, 0, j)),
        ),
        compiler_params=pltpu.CompilerParams(
            dimension_semantics=("parallel", "parallel"),
            vmem_limit_bytes=32 * 1024 * 1024,
        ),
    )(y, scale.reshape(cout, 1), shift.reshape(cout, 1))

    return out[:, :, :m].reshape(n, cout, d, h, wdim)


@jax.jit
def double_conv_right(x_ncdhw, params):
    """Forward pass of DoubleConvRight.  Input/output in PyTorch NCDHW layout.

    Conv biases (params['b1'], params['b2']) are accepted but unused: under
    training-mode BatchNorm a preceding conv bias cannot change the output.
    """
    h = _conv_bn_relu(x_ncdhw, params["w1"], params["g1"], params["be1"])
    h = _conv_bn_relu(h, params["w2"], params["g2"], params["be2"])
    return h


# --------------------------------------------------------------------------- #
# Pure-JAX reference (same numerical policy: bf16 matmul operands, f32 accumulate)
# --------------------------------------------------------------------------- #
def _ref_forward(x, params):
    def conv(x, w, b):
        y = jax.lax.conv_general_dilated(
            x.astype(jnp.bfloat16), w.astype(jnp.bfloat16),
            window_strides=(1, 1, 1), padding=((1, 1),) * 3,
            dimension_numbers=("NCDHW", "OIDHW", "NCDHW"),
            preferred_element_type=jnp.float32)
        return y + b[None, :, None, None, None]

    def bn_relu(y, g, be):
        mean = jnp.mean(y, axis=(0, 2, 3, 4), keepdims=True)
        var = jnp.mean((y - mean) ** 2, axis=(0, 2, 3, 4), keepdims=True)
        yn = (y - mean) * jax.lax.rsqrt(var + EPS)
        yn = yn * g[None, :, None, None, None] + be[None, :, None, None, None]
        return jnp.maximum(yn, 0.0)

    h = bn_relu(conv(x, params["w1"], params["b1"]), params["g1"], params["be1"])
    h = bn_relu(conv(h, params["w2"], params["b2"]), params["g2"], params["be2"])
    return h


# --------------------------------------------------------------------------- #
# Main
# --------------------------------------------------------------------------- #
if __name__ == "__main__":
    key = jax.random.PRNGKey(0)
    ks = jax.random.split(key, 9)

    N, C_IN, C_OUT, D, H, W = 2, 4, 8, 8, 8, 8

    params = {
        "w1": 0.1 * jax.random.normal(ks[0], (C_OUT, C_IN, 3, 3, 3), jnp.float32),
        "b1": 0.1 * jax.random.normal(ks[1], (C_OUT,), jnp.float32),
        "g1": 1.0 + 0.1 * jax.random.normal(ks[2], (C_OUT,), jnp.float32),
        "be1": 0.1 * jax.random.normal(ks[3], (C_OUT,), jnp.float32),
        "w2": 0.1 * jax.random.normal(ks[4], (C_OUT, C_OUT, 3, 3, 3), jnp.float32),
        "b2": 0.1 * jax.random.normal(ks[5], (C_OUT,), jnp.float32),
        "g2": 1.0 + 0.1 * jax.random.normal(ks[6], (C_OUT,), jnp.float32),
        "be2": 0.1 * jax.random.normal(ks[7], (C_OUT,), jnp.float32),
    }

    x = jax.random.normal(ks[8], (N, C_IN, D, H, W), jnp.float32)

    out = double_conv_right(x, params)
    out = jax.block_until_ready(out)

    ref = _ref_forward(x, params)
    assert out.shape == ref.shape == (N, C_OUT, D, H, W)
    max_err = float(jnp.max(jnp.abs(out - ref)))
    assert max_err < 5e-2, f"max abs error too large: {max_err}"

    print("KERNEL_OK")
</pallas_src>

<mosaic_0001>
module attributes {stable_mosaic.version = 11 : i64} {
  func.func @conv_stats_kernel(%arg0: i32, %arg1: i32, %arg2: memref<1x128x256xbf16, #tpu.memory_space<vmem>>, %arg3: memref<8x128xbf16, #tpu.memory_space<vmem>>, %arg4: memref<1x8x256xf32, #tpu.memory_space<vmem>>, %arg5: memref<1x8x128xf32, #tpu.memory_space<vmem>>, %arg6: memref<1x8x128xf32, #tpu.memory_space<vmem>>) attributes {dimension_semantics = [#tpu.dimension_semantics<parallel>, #tpu.dimension_semantics<arbitrary>], iteration_bounds = array<i64: 2, 2>, scalar_prefetch = 0 : i64, scratch_operands = 0 : i64, tpu.core_type = #tpu.core_type<tc>, window_params = [{transform_indices = @transform_0, window_bounds = array<i64: 1, 128, 256>}, {pipeline_mode = #tpu.pipeline_mode<synchronous>, transform_indices = @transform_1, window_bounds = array<i64: 8, 128>}, {transform_indices = @transform_2, window_bounds = array<i64: 1, 8, 256>}, {transform_indices = @transform_3, window_bounds = array<i64: 1, 8, 128>}, {transform_indices = @transform_4, window_bounds = array<i64: 1, 8, 128>}]} {
    %c0 = arith.constant 0 : index
    %c0_0 = arith.constant 0 : index
    %0 = vector.load %arg3[%c0, %c0_0] : memref<8x128xbf16, #tpu.memory_space<vmem>>, vector<8x128xbf16>
    %c0_1 = arith.constant 0 : index
    %c0_2 = arith.constant 0 : index
    %c0_3 = arith.constant 0 : index
    %1 = vector.load %arg2[%c0_1, %c0_2, %c0_3] : memref<1x128x256xbf16, #tpu.memory_space<vmem>>, vector<1x128x256xbf16>
    %2 = vector.shape_cast %1 : vector<1x128x256xbf16> to vector<128x256xbf16>
    %cst = arith.constant dense<0.000000e+00> : vector<8x256xf32>
    %3 = tpu.matmul %0, %2, %cst {dimension_numbers = #tpu.dot_dimension_numbers<[1], [0], [0], [1], [0, 0, 1, 1], [], []>} : vector<8x128xbf16>, vector<128x256xbf16>, vector<8x256xf32> -> vector<8x256xf32>
    %c0_4 = arith.constant 0 : index
    %c0_5 = arith.constant 0 : index
    %c0_6 = arith.constant 0 : index
    %4 = vector.load %arg4[%c0_4, %c0_5, %c0_6] : memref<1x8x256xf32, #tpu.memory_space<vmem>>, vector<1x8x256xf32>
    %5 = vector.shape_cast %4 : vector<1x8x256xf32> to vector<8x256xf32>
    %6 = vector.shape_cast %3 : vector<8x256xf32> to vector<1x8x256xf32>
    tpu.vector_store %arg4[%c0_4, %c0_5, %c0_6], %6 {strides = array<i32>} : memref<1x8x256xf32, #tpu.memory_space<vmem>>, vector<1x8x256xf32>,
    %c0_i32 = arith.constant 0 : i32
    %7 = arith.cmpi eq, %arg1, %c0_i32 : i32
    %8 = arith.extui %7 : i1 to i32
    %c0_i32_7 = arith.constant 0 : i32
    %9 = arith.cmpi ne, %8, %c0_i32_7 : i32
    scf.if %9 {
      %cst_22 = arith.constant 0.000000e+00 : f32
      %31 = vector.broadcast %cst_22 : f32 to vector<1x8x128xf32>
      %c0_23 = arith.constant 0 : index
      %c0_24 = arith.constant 0 : index
      %c0_25 = arith.constant 0 : index
      %32 = vector.load %arg5[%c0_23, %c0_24, %c0_25] : memref<1x8x128xf32, #tpu.memory_space<vmem>>, vector<1x8x128xf32>
      tpu.vector_store %arg5[%c0_23, %c0_24, %c0_25], %31 {strides = array<i32>} : memref<1x8x128xf32, #tpu.memory_space<vmem>>, vector<1x8x128xf32>,
      %cst_26 = arith.constant 0.000000e+00 : f32
      %33 = vector.broadcast %cst_26 : f32 to vector<1x8x128xf32>
      %c0_27 = arith.constant 0 : index
      %c0_28 = arith.constant 0 : index
      %c0_29 = arith.constant 0 : index
      %34 = vector.load %arg6[%c0_27, %c0_28, %c0_29] : memref<1x8x128xf32, #tpu.memory_space<vmem>>, vector<1x8x128xf32>
      tpu.vector_store %arg6[%c0_27, %c0_28, %c0_29], %33 {strides = array<i32>} : memref<1x8x128xf32, #tpu.memory_space<vmem>>, vector<1x8x128xf32>,
    } else {
    }
    %cst_8 = arith.constant dense<0.000000e+00> : vector<8xf32>
    %10 = vector.multi_reduction <add>, %3, %cst_8 [1] : vector<8x256xf32> to vector<8xf32>
    %11 = vector.shape_cast %10 : vector<8xf32> to vector<8x1xf32>
    %12 = arith.mulf %3, %3 : vector<8x256xf32>
    %cst_9 = arith.constant dense<0.000000e+00> : vector<8xf32>
    %13 = vector.multi_reduction <add>, %12, %cst_9 [1] : vector<8x256xf32> to vector<8xf32>
    %14 = vector.shape_cast %13 : vector<8xf32> to vector<8x1xf32>
    %c0_10 = arith.constant 0 : index
    %c0_11 = arith.constant 0 : index
    %c0_12 = arith.constant 0 : index
    %15 = vector.load %arg5[%c0_10, %c0_11, %c0_12] : memref<1x8x128xf32, #tpu.memory_space<vmem>>, vector<1x8x128xf32>
    %16 = vector.shape_cast %15 : vector<1x8x128xf32> to vector<8x128xf32>
    %17 = vector.shape_cast %11 : vector<8x1xf32> to vector<8x1xf32>
    %18 = vector.broadcast %17 : vector<8x1xf32> to vector<8x128xf32>
    %19 = arith.addf %16, %18 : vector<8x128xf32>
    %c0_13 = arith.constant 0 : index
    %c0_14 = arith.constant 0 : index
    %c0_15 = arith.constant 0 : index
    %20 = vector.load %arg5[%c0_13, %c0_14, %c0_15] : memref<1x8x128xf32, #tpu.memory_space<vmem>>, vector<1x8x128xf32>
    %21 = vector.shape_cast %20 : vector<1x8x128xf32> to vector<8x128xf32>
    %22 = vector.shape_cast %19 : vector<8x128xf32> to vector<1x8x128xf32>
    tpu.vector_store %arg5[%c0_13, %c0_14, %c0_15], %22 {strides = array<i32>} : memref<1x8x128xf32, #tpu.memory_space<vmem>>, vector<1x8x128xf32>,
    %c0_16 = arith.constant 0 : index
    %c0_17 = arith.constant 0 : index
    %c0_18 = arith.constant 0 : index
    %23 = vector.load %arg6[%c0_16, %c0_17, %c0_18] : memref<1x8x128xf32, #tpu.memory_space<vmem>>, vector<1x8x128xf32>
    %24 = vector.shape_cast %23 : vector<1x8x128xf32> to vector<8x128xf32>
    %25 = vector.shape_cast %14 : vector<8x1xf32> to vector<8x1xf32>
    %26 = vector.broadcast %25 : vector<8x1xf32> to vector<8x128xf32>
    %27 = arith.addf %24, %26 : vector<8x128xf32>
    %c0_19 = arith.constant 0 : index
    %c0_20 = arith.constant 0 : index
    %c0_21 = arith.constant 0 : index
    %28 = vector.load %arg6[%c0_19, %c0_20, %c0_21] : memref<1x8x128xf32, #tpu.memory_space<vmem>>, vector<1x8x128xf32>
    %29 = vector.shape_cast %28 : vector<1x8x128xf32> to vector<8x128xf32>
    %30 = vector.shape_cast %27 : vector<8x128xf32> to vector<1x8x128xf32>
    tpu.vector_store %arg6[%c0_19, %c0_20, %c0_21], %30 {strides = array<i32>} : memref<1x8x128xf32, #tpu.memory_space<vmem>>, vector<1x8x128xf32>,
    return
  }
  func.func @transform_0(%arg0: i32, %arg1: i32) -> (i32, i32, i32) {
    %c0_i32 = arith.constant 0 : i32
    %c0_i32_0 = arith.constant 0 : i32
    return %arg0, %c0_i32, %arg1 : i32, i32, i32
  }
  func.func @transform_1(%arg0: i32, %arg1: i32) -> (i32, i32) {
    %c0_i32 = arith.constant 0 : i32
    %c0_i32_0 = arith.constant 0 : i32
    %c0_i32_1 = arith.constant 0 : i32
    return %c0_i32, %c0_i32_0 : i32, i32
  }
  func.func @transform_2(%arg0: i32, %arg1: i32) -> (i32, i32, i32) {
    %c0_i32 = arith.constant 0 : i32
    %c0_i32_0 = arith.constant 0 : i32
    return %arg0, %c0_i32, %arg1 : i32, i32, i32
  }
  func.func @transform_3(%arg0: i32, %arg1: i32) -> (i32, i32, i32) {
    %c0_i32 = arith.constant 0 : i32
    %c0_i32_0 = arith.constant 0 : i32
    %c0_i32_1 = arith.constant 0 : i32
    return %arg0, %c0_i32, %c0_i32_0 : i32, i32, i32
  }
  func.func @transform_4(%arg0: i32, %arg1: i32) -> (i32, i32, i32) {
    %c0_i32 = arith.constant 0 : i32
    %c0_i32_0 = arith.constant 0 : i32
    %c0_i32_1 = arith.constant 0 : i32
    return %arg0, %c0_i32, %c0_i32_0 : i32, i32, i32
  }
}

module attributes {stable_mosaic.version = 11 : i64} {
  func.func @bn_relu_kernel(%arg0: i32, %arg1: i32, %arg2: memref<1x8x256xf32, #tpu.memory_space<vmem>>, %arg3: memref<8x1xf32, #tpu.memory_space<vmem>>, %arg4: memref<8x1xf32, #tpu.memory_space<vmem>>, %arg5: memref<1x8x256xf32, #tpu.memory_space<vmem>>) attributes {dimension_semantics = [#tpu.dimension_semantics<parallel>, #tpu.dimension_semantics<parallel>], iteration_bounds = array<i64: 2, 2>, scalar_prefetch = 0 : i64, scratch_operands = 0 : i64, tpu.core_type = #tpu.core_type<tc>, window_params = [{transform_indices = @transform_0, window_bounds = array<i64: 1, 8, 256>}, {pipeline_mode = #tpu.pipeline_mode<synchronous>, transform_indices = @transform_1, window_bounds = array<i64: 8, 1>}, {pipeline_mode = #tpu.pipeline_mode<synchronous>, transform_indices = @transform_2, window_bounds = array<i64: 8, 1>}, {transform_indices = @transform_3, window_bounds = array<i64: 1, 8, 256>}]} {
    %c0 = arith.constant 0 : index
    %c0_0 = arith.constant 0 : index
    %c0_1 = arith.constant 0 : index
    %0 = vector.load %arg2[%c0, %c0_0, %c0_1] : memref<1x8x256xf32, #tpu.memory_space<vmem>>, vector<1x8x256xf32>
    %1 = vector.shape_cast %0 : vector<1x8x256xf32> to vector<8x256xf32>
    %c0_2 = arith.constant 0 : index
    %c0_3 = arith.constant 0 : index
    %2 = vector.load %arg3[%c0_2, %c0_3] : memref<8x1xf32, #tpu.memory_space<vmem>>, vector<8x1xf32>
    %3 = vector.broadcast %2 : vector<8x1xf32> to vector<8x256xf32>
    %4 = arith.mulf %1, %3 : vector<8x256xf32>
    %c0_4 = arith.constant 0 : index
    %c0_5 = arith.constant 0 : index
    %5 = vector.load %arg4[%c0_4, %c0_5] : memref<8x1xf32, #tpu.memory_space<vmem>>, vector<8x1xf32>
    %6 = vector.broadcast %5 : vector<8x1xf32> to vector<8x256xf32>
    %7 = arith.addf %4, %6 : vector<8x256xf32>
    %cst = arith.constant 0.000000e+00 : f32
    %8 = vector.broadcast %cst : f32 to vector<8x256xf32>
    %9 = arith.maximumf %7, %8 : vector<8x256xf32>
    %c0_6 = arith.constant 0 : index
    %c0_7 = arith.constant 0 : index
    %c0_8 = arith.constant 0 : index
    %10 = vector.load %arg5[%c0_6, %c0_7, %c0_8] : memref<1x8x256xf32, #tpu.memory_space<vmem>>, vector<1x8x256xf32>
    %11 = vector.shape_cast %10 : vector<1x8x256xf32> to vector<8x256xf32>
    %12 = vector.shape_cast %9 : vector<8x256xf32> to vector<1x8x256xf32>
    tpu.vector_store %arg5[%c0_6, %c0_7, %c0_8], %12 {strides = array<i32>} : memref<1x8x256xf32, #tpu.memory_space<vmem>>, vector<1x8x256xf32>,
    return
  }
  func.func @transform_0(%arg0: i32, %arg1: i32) -> (i32, i32, i32) {
    %c0_i32 = arith.constant 0 : i32
    %c0_i32_0 = arith.constant 0 : i32
    return %arg0, %c0_i32, %arg1 : i32, i32, i32
  }
  func.func @transform_1(%arg0: i32, %arg1: i32) -> (i32, i32) {
    %c0_i32 = arith.constant 0 : i32
    %c0_i32_0 = arith.constant 0 : i32
    %c0_i32_1 = arith.constant 0 : i32
    return %c0_i32, %c0_i32_0 : i32, i32
  }
  func.func @transform_2(%arg0: i32, %arg1: i32) -> (i32, i32) {
    %c0_i32 = arith.constant 0 : i32
    %c0_i32_0 = arith.constant 0 : i32
    %c0_i32_1 = arith.constant 0 : i32
    return %c0_i32, %c0_i32_0 : i32, i32
  }
  func.func @transform_3(%arg0: i32, %arg1: i32) -> (i32, i32, i32) {
    %c0_i32 = arith.constant 0 : i32
    %c0_i32_0 = arith.constant 0 : i32
    return %arg0, %c0_i32, %arg1 : i32, i32, i32
  }
}

module attributes {stable_mosaic.version = 11 : i64} {
  func.func @conv_stats_kernel(%arg0: i32, %arg1: i32, %arg2: memref<1x256x256xbf16, #tpu.memory_space<vmem>>, %arg3: memref<8x256xbf16, #tpu.memory_space<vmem>>, %arg4: memref<1x8x256xf32, #tpu.memory_space<vmem>>, %arg5: memref<1x8x128xf32, #tpu.memory_space<vmem>>, %arg6: memref<1x8x128xf32, #tpu.memory_space<vmem>>) attributes {dimension_semantics = [#tpu.dimension_semantics<parallel>, #tpu.dimension_semantics<arbitrary>], iteration_bounds = array<i64: 2, 2>, scalar_prefetch = 0 : i64, scratch_operands = 0 : i64, tpu.core_type = #tpu.core_type<tc>, window_params = [{transform_indices = @transform_0, window_bounds = array<i64: 1, 256, 256>}, {pipeline_mode = #tpu.pipeline_mode<synchronous>, transform_indices = @transform_1, window_bounds = array<i64: 8, 256>}, {transform_indices = @transform_2, window_bounds = array<i64: 1, 8, 256>}, {transform_indices = @transform_3, window_bounds = array<i64: 1, 8, 128>}, {transform_indices = @transform_4, window_bounds = array<i64: 1, 8, 128>}]} {
    %c0 = arith.constant 0 : index
    %c0_0 = arith.constant 0 : index
    %0 = vector.load %arg3[%c0, %c0_0] : memref<8x256xbf16, #tpu.memory_space<vmem>>, vector<8x256xbf16>
    %c0_1 = arith.constant 0 : index
    %c0_2 = arith.constant 0 : index
    %c0_3 = arith.constant 0 : index
    %1 = vector.load %arg2[%c0_1, %c0_2, %c0_3] : memref<1x256x256xbf16, #tpu.memory_space<vmem>>, vector<1x256x256xbf16>
    %2 = vector.shape_cast %1 : vector<1x256x256xbf16> to vector<256x256xbf16>
    %cst = arith.constant dense<0.000000e+00> : vector<8x256xf32>
    %3 = tpu.matmul %0, %2, %cst {dimension_numbers = #tpu.dot_dimension_numbers<[1], [0], [0], [1], [0, 0, 1, 1], [], []>} : vector<8x256xbf16>, vector<256x256xbf16>, vector<8x256xf32> -> vector<8x256xf32>
    %c0_4 = arith.constant 0 : index
    %c0_5 = arith.constant 0 : index
    %c0_6 = arith.constant 0 : index
    %4 = vector.load %arg4[%c0_4, %c0_5, %c0_6] : memref<1x8x256xf32, #tpu.memory_space<vmem>>, vector<1x8x256xf32>
    %5 = vector.shape_cast %4 : vector<1x8x256xf32> to vector<8x256xf32>
    %6 = vector.shape_cast %3 : vector<8x256xf32> to vector<1x8x256xf32>
    tpu.vector_store %arg4[%c0_4, %c0_5, %c0_6], %6 {strides = array<i32>} : memref<1x8x256xf32, #tpu.memory_space<vmem>>, vector<1x8x256xf32>,
    %c0_i32 = arith.constant 0 : i32
    %7 = arith.cmpi eq, %arg1, %c0_i32 : i32
    %8 = arith.extui %7 : i1 to i32
    %c0_i32_7 = arith.constant 0 : i32
    %9 = arith.cmpi ne, %8, %c0_i32_7 : i32
    scf.if %9 {
      %cst_22 = arith.constant 0.000000e+00 : f32
      %31 = vector.broadcast %cst_22 : f32 to vector<1x8x128xf32>
      %c0_23 = arith.constant 0 : index
      %c0_24 = arith.constant 0 : index
      %c0_25 = arith.constant 0 : index
      %32 = vector.load %arg5[%c0_23, %c0_24, %c0_25] : memref<1x8x128xf32, #tpu.memory_space<vmem>>, vector<1x8x128xf32>
      tpu.vector_store %arg5[%c0_23, %c0_24, %c0_25], %31 {strides = array<i32>} : memref<1x8x128xf32, #tpu.memory_space<vmem>>, vector<1x8x128xf32>,
      %cst_26 = arith.constant 0.000000e+00 : f32
      %33 = vector.broadcast %cst_26 : f32 to vector<1x8x128xf32>
      %c0_27 = arith.constant 0 : index
      %c0_28 = arith.constant 0 : index
      %c0_29 = arith.constant 0 : index
      %34 = vector.load %arg6[%c0_27, %c0_28, %c0_29] : memref<1x8x128xf32, #tpu.memory_space<vmem>>, vector<1x8x128xf32>
      tpu.vector_store %arg6[%c0_27, %c0_28, %c0_29], %33 {strides = array<i32>} : memref<1x8x128xf32, #tpu.memory_space<vmem>>, vector<1x8x128xf32>,
    } else {
    }
    %cst_8 = arith.constant dense<0.000000e+00> : vector<8xf32>
    %10 = vector.multi_reduction <add>, %3, %cst_8 [1] : vector<8x256xf32> to vector<8xf32>
    %11 = vector.shape_cast %10 : vector<8xf32> to vector<8x1xf32>
    %12 = arith.mulf %3, %3 : vector<8x256xf32>
    %cst_9 = arith.constant dense<0.000000e+00> : vector<8xf32>
    %13 = vector.multi_reduction <add>, %12, %cst_9 [1] : vector<8x256xf32> to vector<8xf32>
    %14 = vector.shape_cast %13 : vector<8xf32> to vector<8x1xf32>
    %c0_10 = arith.constant 0 : index
    %c0_11 = arith.constant 0 : index
    %c0_12 = arith.constant 0 : index
    %15 = vector.load %arg5[%c0_10, %c0_11, %c0_12] : memref<1x8x128xf32, #tpu.memory_space<vmem>>, vector<1x8x128xf32>
    %16 = vector.shape_cast %15 : vector<1x8x128xf32> to vector<8x128xf32>
    %17 = vector.shape_cast %11 : vector<8x1xf32> to vector<8x1xf32>
    %18 = vector.broadcast %17 : vector<8x1xf32> to vector<8x128xf32>
    %19 = arith.addf %16, %18 : vector<8x128xf32>
    %c0_13 = arith.constant 0 : index
    %c0_14 = arith.constant 0 : index
    %c0_15 = arith.constant 0 : index
    %20 = vector.load %arg5[%c0_13, %c0_14, %c0_15] : memref<1x8x128xf32, #tpu.memory_space<vmem>>, vector<1x8x128xf32>
    %21 = vector.shape_cast %20 : vector<1x8x128xf32> to vector<8x128xf32>
    %22 = vector.shape_cast %19 : vector<8x128xf32> to vector<1x8x128xf32>
    tpu.vector_store %arg5[%c0_13, %c0_14, %c0_15], %22 {strides = array<i32>} : memref<1x8x128xf32, #tpu.memory_space<vmem>>, vector<1x8x128xf32>,
    %c0_16 = arith.constant 0 : index
    %c0_17 = arith.constant 0 : index
    %c0_18 = arith.constant 0 : index
    %23 = vector.load %arg6[%c0_16, %c0_17, %c0_18] : memref<1x8x128xf32, #tpu.memory_space<vmem>>, vector<1x8x128xf32>
    %24 = vector.shape_cast %23 : vector<1x8x128xf32> to vector<8x128xf32>
    %25 = vector.shape_cast %14 : vector<8x1xf32> to vector<8x1xf32>
    %26 = vector.broadcast %25 : vector<8x1xf32> to vector<8x128xf32>
    %27 = arith.addf %24, %26 : vector<8x128xf32>
    %c0_19 = arith.constant 0 : index
    %c0_20 = arith.constant 0 : index
    %c0_21 = arith.constant 0 : index
    %28 = vector.load %arg6[%c0_19, %c0_20, %c0_21] : memref<1x8x128xf32, #tpu.memory_space<vmem>>, vector<1x8x128xf32>
    %29 = vector.shape_cast %28 : vector<1x8x128xf32> to vector<8x128xf32>
    %30 = vector.shape_cast %27 : vector<8x128xf32> to vector<1x8x128xf32>
    tpu.vector_store %arg6[%c0_19, %c0_20, %c0_21], %30 {strides = array<i32>} : memref<1x8x128xf32, #tpu.memory_space<vmem>>, vector<1x8x128xf32>,
    return
  }
  func.func @transform_0(%arg0: i32, %arg1: i32) -> (i32, i32, i32) {
    %c0_i32 = arith.constant 0 : i32
    %c0_i32_0 = arith.constant 0 : i32
    return %arg0, %c0_i32, %arg1 : i32, i32, i32
  }
  func.func @transform_1(%arg0: i32, %arg1: i32) -> (i32, i32) {
    %c0_i32 = arith.constant 0 : i32
    %c0_i32_0 = arith.constant 0 : i32
    %c0_i32_1 = arith.constant 0 : i32
    return %c0_i32, %c0_i32_0 : i32, i32
  }
  func.func @transform_2(%arg0: i32, %arg1: i32) -> (i32, i32, i32) {
    %c0_i32 = arith.constant 0 : i32
    %c0_i32_0 = arith.constant 0 : i32
    return %arg0, %c0_i32, %arg1 : i32, i32, i32
  }
  func.func @transform_3(%arg0: i32, %arg1: i32) -> (i32, i32, i32) {
    %c0_i32 = arith.constant 0 : i32
    %c0_i32_0 = arith.constant 0 : i32
    %c0_i32_1 = arith.constant 0 : i32
    return %arg0, %c0_i32, %c0_i32_0 : i32, i32, i32
  }
  func.func @transform_4(%arg0: i32, %arg1: i32) -> (i32, i32, i32) {
    %c0_i32 = arith.constant 0 : i32
    %c0_i32_0 = arith.constant 0 : i32
    %c0_i32_1 = arith.constant 0 : i32
    return %arg0, %c0_i32, %c0_i32_0 : i32, i32, i32
  }
}

</mosaic_0001>

<llo_original>
// kernel: double_conv_right.4
$region0: #{double_conv_right.4}
  #allocation0 [shape = 'u32[]', space=smem, size = 0x4, offset = 0x4, fixed_abs, tag = 'smem constant byte address 0x4 - core index']
  #allocation1 [shape = 'u32[72,128]{1,0:T(1,128)}', space=vmem, size = 0x9000, scoped, tag = 'internal scratch']
  %s0 = inlined_call_operand.vmem [shape: bf16[2,128,512], index: 0, kind: input, shape index: {}]
  %s1 = inlined_call_operand.vmem [shape: bf16[8,128], index: 1, kind: input, shape index: {}]
  %s2 = inlined_call_operand.vmem [shape: f32[2,8,512], index: 2, kind: output, shape index: {0}]
  %s3 = inlined_call_operand.vmem [shape: f32[2,8,128], index: 3, kind: output, shape index: {1}]
  %s4 = inlined_call_operand.vmem [shape: f32[2,8,128], index: 4, kind: output, shape index: {2}]
  %5 = xla_tuple %s2, %s3, %s4
  %s6 = sld [smem:[#allocation0]]
  $region99: #{double_conv_right.4} parent=0
    _
  %s8 = ssub.s32 1, %s6
  %s9 = scalar_select 0, %s8, %s6
  $region1: #{double_conv_right.4} parent=0
    #allocation2 [shape = 'u8[131072]{0}', space=vmem, size = 0x20000, scoped, tag = 'input window, operand 0']
    loop: start=0, step=1, limit=6
    $region2: #{double_conv_right.4} parent=1 // loop_pre_header
      _
    $region3: #{double_conv_right.4} parent=1 // loop_header
      %s11 = sphi 0, %s15
      %p12 = scmp.ge.s32.totalorder %s11, 6
      %s18 = sphi 0, %s30
      %s19 = sphi 0, %s26
      %s20 = sphi 0, %s18
      %s21 = sphi 0, %s19
      %s22 = sphi 0, %s20
      %s23 = sphi 0, %s21
      %s35 = sphi 0, %s37
      %s38 = sphi 0, %s35
      %s39 = sphi 0, %s38
      %s55 = sphi 0, %s39
      %s59 = sphi 0, %s59
      %s61 = sphi 0, %s59
      %s62 = sphi 0, %s61
      %s76 = sphi 0, %s62
      %s84 = sphi 0, %s86
      %s87 = sphi 0, %s84
      %s88 = sphi 0, %s87
      %s104 = sphi 0, %s88
      %s110 = sphi 0, %s112
      %s113 = sphi 0, %s110
      %s114 = sphi 0, %s113
      %s130 = sphi 0, %s114
      %s136 = sphi 0, %s138
      %s139 = sphi 0, %s136
      %s140 = sphi 0, %s139
      %s156 = sphi 0, %s140
    $region4: #{double_conv_right.4} parent=1 // loop_header_branch
      %14 = sbr.rel (%p12) target = $region8
    $region5: #{double_conv_right.4} parent=1 // loop_body
      %s16 = ssub.s32 %s11, 1
      %s17 = ssub.s32 %s11, 2
      %s24 = sadd.s32 1, %s19
      %p25 = scmp.ge.s32.totalorder %s24, 2
      %s26 = scalar_select %p25, 0, %s24
      %s27 = sadd.s32 1, %s18
      %s28 = scalar_select %p25, %s27, %s18
      %p29 = scmp.ge.s32.totalorder %s28, 2
      %s30 = scalar_select %p29, 0, %s28
      %s31 = ssub.s32 %s18, %s30
      %s32 = ssub.s32 %s19, %s26
      %s33 = sor.u32 %s31, %s32
      %p34 = scmp.eq.s32.totalorder %s33, 0
      %s36 = sadd.s32 %s35, 1
      %s37 = scalar_select %p34, %s35, %s36
      %p40 = pneg %p34
      %p41 = scmp.eq.s32.totalorder %s11, 3
      %p42 = por %p40, %p41
      %p43 = scmp.ne.s32.totalorder %s35, %s38
      %p44 = scmp.eq.s32.totalorder %s11, 0
      %p45 = por %p43, %p44
      %p46 = scmp.ne.s32.totalorder %s35, %s38
      %p47 = scmp.eq.s32.totalorder %s16, 3
      %p48 = por %p46, %p47
      %p49 = scmp.ne.s32.totalorder %s38, %s39
      %p50 = scmp.eq.s32.totalorder %s16, 0
      %p51 = por %p49, %p50
      %p52 = scmp.ne.s32.totalorder %s38, %s39
      %p53 = scmp.eq.s32.totalorder %s17, 3
      %p54 = por %p52, %p53
      %p56 = scmp.ne.s32.totalorder %s39, %s55
      %p57 = scmp.eq.s32.totalorder %s17, 0
      %p58 = por %p56, %p57
      %s60 = sadd.s32 %s59, 1
      %p63 = scmp.eq.s32.totalorder %s11, 3
      %p64 = scmp.ne.s32.totalorder %s59, %s61
      %p65 = scmp.eq.s32.totalorder %s11, 0
      %p66 = por %p64, %p65
      %p67 = scmp.ne.s32.totalorder %s59, %s61
      %p68 = scmp.eq.s32.totalorder %s16, 3
      %p69 = por %p67, %p68
      %p70 = scmp.ne.s32.totalorder %s61, %s62
      %p71 = scmp.eq.s32.totalorder %s16, 0
      %p72 = por %p70, %p71
      %p73 = scmp.ne.s32.totalorder %s61, %s62
      %p74 = scmp.eq.s32.totalorder %s17, 3
      %p75 = por %p73, %p74
      %p77 = scmp.ne.s32.totalorder %s62, %s76
      %p78 = scmp.eq.s32.totalorder %s17, 0
      %p79 = por %p77, %p78
      %s80 = ssub.s32 %s18, %s30
      %s81 = ssub.s32 %s19, %s26
      %s82 = sor.u32 %s80, %s81
      %p83 = scmp.eq.s32.totalorder %s82, 0
      %s85 = sadd.s32 %s84, 1
      %s86 = scalar_select %p83, %s84, %s85
      %p89 = pneg %p83
      %p90 = scmp.eq.s32.totalorder %s11, 3
      %p91 = por %p89, %p90
      %p92 = scmp.ne.s32.totalorder %s84, %s87
      %p93 = scmp.eq.s32.totalorder %s11, 0
      %p94 = por %p92, %p93
      %p95 = scmp.ne.s32.totalorder %s84, %s87
      %p96 = scmp.eq.s32.totalorder %s16, 3
      %p97 = por %p95, %p96
      %p98 = scmp.ne.s32.totalorder %s87, %s88
      %p99 = scmp.eq.s32.totalorder %s16, 0
      %p100 = por %p98, %p99
      %p101 = scmp.ne.s32.totalorder %s87, %s88
      %p102 = scmp.eq.s32.totalorder %s17, 3
      %p103 = por %p101, %p102
      %p105 = scmp.ne.s32.totalorder %s88, %s104
      %p106 = scmp.eq.s32.totalorder %s17, 0
      %p107 = por %p105, %p106
      %s108 = ssub.s32 %s18, %s30
      %p109 = scmp.eq.s32.totalorder %s108, 0
      %s111 = sadd.s32 %s110, 1
      %s112 = scalar_select %p109, %s110, %s111
      %p115 = pneg %p109
      %p116 = scmp.eq.s32.totalorder %s11, 3
      %p117 = por %p115, %p116
      %p118 = scmp.ne.s32.totalorder %s110, %s113
      %p119 = scmp.eq.s32.totalorder %s11, 0
      %p120 = por %p118, %p119
      %p121 = scmp.ne.s32.totalorder %s110, %s113
      %p122 = scmp.eq.s32.totalorder %s16, 3
      %p123 = por %p121, %p122
      %p124 = scmp.ne.s32.totalorder %s113, %s114
      %p125 = scmp.eq.s32.totalorder %s16, 0
      %p126 = por %p124, %p125
      %p127 = scmp.ne.s32.totalorder %s113, %s114
      %p128 = scmp.eq.s32.totalorder %s17, 3
      %p129 = por %p127, %p128
      %p131 = scmp.ne.s32.totalorder %s114, %s130
      %p132 = scmp.eq.s32.totalorder %s17, 0
      %p133 = por %p131, %p132
      %s134 = ssub.s32 %s18, %s30
      %p135 = scmp.eq.s32.totalorder %s134, 0
      %s137 = sadd.s32 %s136, 1
      %s138 = scalar_select %p135, %s136, %s137
      %p141 = pneg %p135
      %p142 = scmp.eq.s32.totalorder %s11, 3
      %p143 = por %p141, %p142
      %p144 = scmp.ne.s32.totalorder %s136, %s139
      %p145 = scmp.eq.s32.totalorder %s11, 0
      %p146 = por %p144, %p145
      %p147 = scmp.ne.s32.totalorder %s136, %s139
      %p148 = scmp.eq.s32.totalorder %s16, 3
      %p149 = por %p147, %p148
      %p150 = scmp.ne.s32.totalorder %s139, %s140
      %p151 = scmp.eq.s32.totalorder %s16, 0
      %p152 = por %p150, %p151
      %p153 = scmp.ne.s32.totalorder %s139, %s140
      %p154 = scmp.eq.s32.totalorder %s17, 3
      %p155 = por %p153, %p154
      %p157 = scmp.ne.s32.totalorder %s140, %s156
      %p158 = scmp.eq.s32.totalorder %s17, 0
      %p159 = por %p157, %p158
      %p160 = scmp.le.s32.totalorder 1, %s11
      %p161 = scmp.lt.s32.totalorder %s11, 5
      %p162 = pnand %p160, %p161
      %p163 = pneg %p162
      // Predicated region
      $region9: #{double_conv_right.4} parent=5 // pred_check
        _
      $region10: #{double_conv_right.4} parent=5 // pred_check_branch
        %165 = sbr.rel (%p162) target = $region12
      $region11: #{double_conv_right.4} parent=5 // pred_region
        %s166 = ssub.s32 %s11, 1
        // Predicated region
        $region13: #{double_conv_right.4} parent=11 // pred_check
          %p167 = pneg %p72
        $region14: #{double_conv_right.4} parent=11 // pred_check_branch
          %169 = sbr.rel (%p167) target = $region16
        $region15: #{double_conv_right.4} parent=11 // pred_region
          _
        $region16: #{double_conv_right.4} parent=11 // pred_fallthru
          _
      $region12: #{double_conv_right.4} parent=5 // pred_fallthru
        _
      %p170 = scmp.lt.s32.totalorder %s11, 4
      // Predicated region
      $region17: #{double_conv_right.4} parent=5 // pred_check
        %p171 = pneg %p170
      $region18: #{double_conv_right.4} parent=5 // pred_check_branch
        %173 = sbr.rel (%p171) target = $region20
      $region19: #{double_conv_right.4} parent=5 // pred_region
        // Predicated region
        $region21: #{double_conv_right.4} parent=19 // pred_check
          %p174 = pneg %p45
        $region22: #{double_conv_right.4} parent=19 // pred_check_branch
          %176 = sbr.rel (%p174) target = $region24
        $region23: #{double_conv_right.4} parent=19 // pred_region
          %s177 = sand.u32 %s35, 1
          %s178 = sand.u32 %s35, 1
          %s179 = smul.addr %s178, 128
          %s180 = scalar_lea.vmem [#allocation2], %s179
          %s181 = smul.u32 2, %s19
          %s182 = smul.addr %s18, 64
          %s183 = sadd.s32 %s181, %s182
          %s184 = smul.addr %s183, 4
          %s185 = scalar_lea.vmem %s0, %s184
          // Predicated region
          $region25: #{double_conv_right.4} parent=23 // pred_check
            _
          $region26: #{double_conv_right.4} parent=23 // pred_check_branch
            %187 = sbr.rel (0) target = $region28
          $region27: #{double_conv_right.4} parent=23 // pred_region
            // Predicated region
            $region29: #{double_conv_right.4} parent=27 // pred_check
              _
            $region30: #{double_conv_right.4} parent=27 // pred_check_branch
              %189 = sbr.rel (0) target = $region32
            $region31: #{double_conv_right.4} parent=27 // pred_region
              // Predicated region
              $region44: #{double_conv_right.4} parent=31 // pred_check
                _
              $region45: #{double_conv_right.4} parent=31 // pred_check_branch
                %235 = sbr.rel (0) target = $region47
              $region46: #{double_conv_right.4} parent=31 // pred_region
                loop: start=0, step=1, limit=1
                $region48: #{double_conv_right.4} parent=46 // loop_pre_header
                  _
                $region49: #{double_conv_right.4} parent=46 // loop_header
                  %s237 = sphi 0, %s241
                  %p238 = scmp.ge.s32.totalorder %s237, 1
                  %s242 = sphi %s185, %s185
                  %s243 = sphi %s180, %s180
                $region50: #{double_conv_right.4} parent=46 // loop_header_branch
                  %240 = sbr.rel (%p238) target = $region54
                $region51: #{double_conv_right.4} parent=46 // loop_body
                  %v244 = vld [vmem:[%s242] sm:$0xff]
                  %245 = vst [vmem:[%s243] sm:$0xff] %v244
                  %v246 = vld [vmem:[%s242 + $0x10] sm:$0xff]
                  %247 = vst [vmem:[%s243 + $0x8] sm:$0xff] %v246
                  %v248 = vld [vmem:[%s242 + $0x20] sm:$0xff]
                  %249 = vst [vmem:[%s243 + $0x10] sm:$0xff] %v248
                  %v250 = vld [vmem:[%s242 + $0x30] sm:$0xff]
                  %251 = vst [vmem:[%s243 + $0x18] sm:$0xff] %v250
                  %v252 = vld [vmem:[%s242 + $0x40] sm:$0xff]
                  %253 = vst [vmem:[%s243 + $0x20] sm:$0xff] %v252
                  %v254 = vld [vmem:[%s242 + $0x50] sm:$0xff]
                  %255 = vst [vmem:[%s243 + $0x28] sm:$0xff] %v254
                  %v256 = vld [vmem:[%s242 + $0x60] sm:$0xff]
                  %257 = vst [vmem:[%s243 + $0x30] sm:$0xff] %v256
                  %v258 = vld [vmem:[%s242 + $0x70] sm:$0xff]
                  %259 = vst [vmem:[%s243 + $0x38] sm:$0xff] %v258
                  %v260 = vld [vmem:[%s242 + $0x80] sm:$0xff]
                  %261 = vst [vmem:[%s243 + $0x40] sm:$0xff] %v260
                  %v262 = vld [vmem:[%s242 + $0x90] sm:$0xff]
                  %263 = vst [vmem:[%s243 + $0x48] sm:$0xff] %v262
                  %v264 = vld [vmem:[%s242 + $0xa0] sm:$0xff]
                  %265 = vst [vmem:[%s243 + $0x50] sm:$0xff] %v264
                  %v266 = vld [vmem:[%s242 + $0xb0] sm:$0xff]
                  %267 = vst [vmem:[%s243 + $0x58] sm:$0xff] %v266
                  %v268 = vld [vmem:[%s242 + $0xc0] sm:$0xff]
                  %269 = vst [vmem:[%s243 + $0x60] sm:$0xff] %v268
                  %v270 = vld [vmem:[%s242 + $0xd0] sm:$0xff]
                  %271 = vst [vmem:[%s243 + $0x68] sm:$0xff] %v270
                  %v272 = vld [vmem:[%s242 + $0xe0] sm:$0xff]
                  %273 = vst [vmem:[%s243 + $0x70] sm:$0xff] %v272
                  %v274 = vld [vmem:[%s242 + $0xf0] sm:$0xff]
                  %275 = vst [vmem:[%s243 + $0x78] sm:$0xff] %v274
                $region52: #{double_conv_right.4} parent=46 // loop_footer
                  %s241 = sadd.s32 1, %s237
                $region53: #{double_conv_right.4} parent=46 // loop_footer_branch
                  %236 = sbr.rel target = $region49
                $region54: #{double_conv_right.4} parent=46 // loop_exit
                  _
              $region47: #{double_conv_right.4} parent=31 // pred_fallthru
                _
              // Predicated region
              $region55: #{double_conv_right.4} parent=31 // pred_check
                _
              $region56: #{double_conv_right.4} parent=31 // pred_check_branch
                %277 = sbr.rel target = $region58
              $region57: #{double_conv_right.4} parent=31 // pred_region
                _
              $region58: #{double_conv_right.4} parent=31 // pred_fallthru
                _
            $region32: #{double_conv_right.4} parent=27 // pred_fallthru
              _
            // Predicated region
            $region33: #{double_conv_right.4} parent=27 // pred_check
              _
            $region34: #{double_conv_right.4} parent=27 // pred_check_branch
              %191 = sbr.rel target = $region36
            $region35: #{double_conv_right.4} parent=27 // pred_region
              %s193 = ssub.s32 256, 1
              loop: start=0, step=1, limit=1
              $region37: #{double_conv_right.4} parent=35 // loop_pre_header
                _
              $region38: #{double_conv_right.4} parent=35 // loop_header
                %s195 = sphi 0, %s199
                %p196 = scmp.ge.s32.totalorder %s195, 1
                %s200 = sphi %s185, %s185
                %s201 = sphi %s180, %s180
              $region39: #{double_conv_right.4} parent=35 // loop_header_branch
                %198 = sbr.rel (%p196) target = $region43
              $region40: #{double_conv_right.4} parent=35 // loop_body
                %v202 = vld [vmem:[%s200] sm:%s193]
                %203 = vst [vmem:[%s201] sm:%s193] %v202
                %v204 = vld [vmem:[%s200 + $0x10] sm:%s193]
                %205 = vst [vmem:[%s201 + $0x8] sm:%s193] %v204
                %v206 = vld [vmem:[%s200 + $0x20] sm:%s193]
                %207 = vst [vmem:[%s201 + $0x10] sm:%s193] %v206
                %v208 = vld [vmem:[%s200 + $0x30] sm:%s193]
                %209 = vst [vmem:[%s201 + $0x18] sm:%s193] %v208
                %v210 = vld [vmem:[%s200 + $0x40] sm:%s193]
                %211 = vst [vmem:[%s201 + $0x20] sm:%s193] %v210
                %v212 = vld [vmem:[%s200 + $0x50] sm:%s193]
                %213 = vst [vmem:[%s201 + $0x28] sm:%s193] %v212
                %v214 = vld [vmem:[%s200 + $0x60] sm:%s193]
                %215 = vst [vmem:[%s201 + $0x30] sm:%s193] %v214
                %v216 = vld [vmem:[%s200 + $0x70] sm:%s193]
                %217 = vst [vmem:[%s201 + $0x38] sm:%s193] %v216
                %v218 = vld [vmem:[%s200 + $0x80] sm:%s193]
                %219 = vst [vmem:[%s201 + $0x40] sm:%s193] %v218
                %v220 = vld [vmem:[%s200 + $0x90] sm:%s193]
                %221 = vst [vmem:[%s201 + $0x48] sm:%s193] %v220
                %v222 = vld [vmem:[%s200 + $0xa0] sm:%s193]
                %223 = vst [vmem:[%s201 + $0x50] sm:%s193] %v222
                %v224 = vld [vmem:[%s200 + $0xb0] sm:%s193]
                %225 = vst [vmem:[%s201 + $0x58] sm:%s193] %v224
                %v226 = vld [vmem:[%s200 + $0xc0] sm:%s193]
                %227 = vst [vmem:[%s201 + $0x60] sm:%s193] %v226
                %v228 = vld [vmem:[%s200 + $0xd0] sm:%s193]
                %229 = vst [vmem:[%s201 + $0x68] sm:%s193] %v228
                %v230 = vld [vmem:[%s200 + $0xe0] sm:%s193]
                %231 = vst [vmem:[%s201 + $0x70] sm:%s193] %v230
                %v232 = vld [vmem:[%s200 + $0xf0] sm:%s193]
                %233 = vst [vmem:[%s201 + $0x78] sm:%s193] %v232
              $region41: #{double_conv_right.4} parent=35 // loop_footer
                %s199 = sadd.s32 1, %s195
              $region42: #{double_conv_right.4} parent=35 // loop_footer_branch
                %194 = sbr.rel target = $region38
              $region43: #{double_conv_right.4} parent=35 // loop_exit
                _
            $region36: #{double_conv_right.4} parent=27 // pred_fallthru
              _
          $region28: #{double_conv_right.4} parent=23 // pred_fallthru
            _
          %278 = vnop
        $region24: #{double_conv_right.4} parent=19 // pred_fallthru
          _
      $region20: #{double_conv_right.4} parent=5 // pred_fallthru
        _
      %p279 = scmp.le.s32.totalorder 1, %s11
      %p280 = scmp.lt.s32.totalorder %s11, 5
      %p281 = pnand %p279, %p280
      %p282 = pneg %p281
      // Predicated region
      $region59: #{double_conv_right.4} parent=5 // pred_check
        _
      $region60: #{double_conv_right.4} parent=5 // pred_check_branch
        %284 = sbr.rel (%p281) target = $region62
      $region61: #{double_conv_right.4} parent=5 // pred_region
        %s285 = ssub.s32 %s11, 1
        %s286 = sand.u32 %s38, 1
        %s287 = sand.u32 %s38, 1
        %s288 = smul.addr %s287, 128
        %s289 = scalar_lea.vmem [#allocation2], %s288
        // Predicated region
        $region63: #{double_conv_right.4} parent=61 // pred_check
          %p290 = pneg %p51
        $region64: #{double_conv_right.4} parent=61 // pred_check_branch
          %292 = sbr.rel (%p290) target = $region66
        $region65: #{double_conv_right.4} parent=61 // pred_region
          _
        $region66: #{double_conv_right.4} parent=61 // pred_fallthru
          _
        %s293 = sand.u32 %s38, 1
        %s294 = sand.u32 %s38, 1
        %s295 = smul.addr %s294, 128
        %s296 = scalar_lea.vmem [#allocation2], %s295
        %p297 = pneg %p51
        %p298 = pneg %p48
        %p299 = pneg %p72
        %p300 = pneg %p69
        %p301 = pneg %p100
        %p302 = pneg %p97
        %s303 = smul.u32 2, %s21
        %p304 = scmp.lt.s32.totalorder %s20, 1
        %s305 = scalar_select %p304, %s20, 1
        %p306 = scmp.lt.s32.totalorder %s303, 3
        %s307 = scalar_select %p306, %s303, 3
        %s308 = smul.addr %s305, 4
        %s309 = sadd.s32 %s307, %s308
        %s310 = smul.addr %s309, 8
        %s311 = scalar_lea.vmem %s2, %s310
        %p312 = pneg %p126
        %p313 = pneg %p123
        %p314 = scmp.lt.s32.totalorder %s20, 1
        %s315 = scalar_select %p314, %s20, 1
        %s316 = smul.addr %s315, 8
        %s317 = scalar_lea.vmem %s3, %s316
        %p318 = pneg %p152
        %p319 = pneg %p149
        %p320 = scmp.lt.s32.totalorder %s20, 1
        %s321 = scalar_select %p320, %s20, 1
        %s322 = smul.addr %s321, 8
        %s323 = scalar_lea.vmem %s4, %s322
        %s324 = smul.u32 2, %s21
        %s325 = smul.u32 2, %s21
        %p326 = scmp.lt.s32.totalorder %s20, 1
        %s327 = scalar_select %p326, %s20, 1
        %p328 = scmp.lt.s32.totalorder %s325, 3
        %s329 = scalar_select %p328, %s325, 3
        %s330 = smul.addr %s327, 4
        %s331 = sadd.s32 %s329, %s330
        %s332 = smul.addr %s331, 8
        %s333 = scalar_lea.vmem %s2, %s332
        %s334 = smul.u32 2, %s21
        %p335 = scmp.lt.s32.totalorder %s20, 1
        %s336 = scalar_select %p335, %s20, 1
        %s337 = smul.addr %s336, 8
        %s338 = scalar_lea.vmem %s3, %s337
        %p339 = scmp.lt.s32.totalorder %s20, 1
        %s340 = scalar_select %p339, %s20, 1
        %s341 = smul.addr %s340, 8
        %s342 = scalar_lea.vmem %s4, %s341
        %v343 = vld [vmem:[%s1] sm:$0xf]
        %v344 = vld [vmem:[%s289] sm:$0xff]
        %v345 = vld [vmem:[%s289 + $0x8] sm:$0xff]
        %v346 = vld [vmem:[%s289 + $0x10] sm:$0xff]
        %v347 = vld [vmem:[%s289 + $0x18] sm:$0xff]
        %v348 = vld [vmem:[%s289 + $0x20] sm:$0xff]
        %v349 = vld [vmem:[%s289 + $0x28] sm:$0xff]
        %v350 = vld [vmem:[%s289 + $0x30] sm:$0xff]
        %v351 = vld [vmem:[%s289 + $0x38] sm:$0xff]
        %v352 = vld [vmem:[%s289 + $0x40] sm:$0xff]
        %v353 = vld [vmem:[%s289 + $0x48] sm:$0xff]
        %v354 = vld [vmem:[%s289 + $0x50] sm:$0xff]
        %v355 = vld [vmem:[%s289 + $0x58] sm:$0xff]
        %v356 = vld [vmem:[%s289 + $0x60] sm:$0xff]
        %v357 = vld [vmem:[%s289 + $0x68] sm:$0xff]
        %v358 = vld [vmem:[%s289 + $0x70] sm:$0xff]
        %v359 = vld [vmem:[%s289 + $0x78] sm:$0xff]
        %v376 = vunpack.c.l.b16 %v344
        %v377 = vunpack.c.h.b16 %v344
        %v378 = vunpack.c.l.b16 %v345
        %v379 = vunpack.c.h.b16 %v345
        %v380 = vunpack.c.l.b16 %v346
        %v381 = vunpack.c.h.b16 %v346
        %v382 = vunpack.c.l.b16 %v347
        %v383 = vunpack.c.h.b16 %v347
        %v384 = vunpack.c.l.b16 %v348
        %v385 = vunpack.c.h.b16 %v348
        %v386 = vunpack.c.l.b16 %v349
        %v387 = vunpack.c.h.b16 %v349
        %v388 = vunpack.c.l.b16 %v350
        %v389 = vunpack.c.h.b16 %v350
        %v390 = vunpack.c.l.b16 %v351
        %v391 = vunpack.c.h.b16 %v351
        %v392 = vunpack.c.l.b16 %v352
        %v393 = vunpack.c.h.b16 %v352
        %v394 = vunpack.c.l.b16 %v353
        %v395 = vunpack.c.h.b16 %v353
        %v396 = vunpack.c.l.b16 %v354
        %v397 = vunpack.c.h.b16 %v354
        %v398 = vunpack.c.l.b16 %v355
        %v399 = vunpack.c.h.b16 %v355
        %v400 = vunpack.c.l.b16 %v356
        %v401 = vunpack.c.h.b16 %v356
        %v402 = vunpack.c.l.b16 %v357
        %v403 = vunpack.c.h.b16 %v357
        %v404 = vunpack.c.l.b16 %v358
        %v405 = vunpack.c.h.b16 %v358
        %v406 = vunpack.c.l.b16 %v359
        %v407 = vunpack.c.h.b16 %v359
        %v408 = vpack.c.b16 %v378, %v376
        %v409 = vpack.c.b16 %v379, %v377
        %v410 = vpack.c.b16 %v382, %v380
        %v411 = vpack.c.b16 %v383, %v381
        %v412 = vpack.c.b16 %v386, %v384
        %v413 = vpack.c.b16 %v387, %v385
        %v414 = vpack.c.b16 %v390, %v388
        %v415 = vpack.c.b16 %v391, %v389
        %v416 = vpack.c.b16 %v394, %v392
        %v417 = vpack.c.b16 %v395, %v393
        %v418 = vpack.c.b16 %v398, %v396
        %v419 = vpack.c.b16 %v399, %v397
        %v420 = vpack.c.b16 %v402, %v400
        %v421 = vpack.c.b16 %v403, %v401
        %v422 = vpack.c.b16 %v406, %v404
        %v423 = vpack.c.b16 %v407, %v405
        %440 = vmatpush.bf16.msra.mxu0 %v422
        %441 = vmatpush.bf16.msra.mxu0 %v420
        %442 = vmatpush.bf16.msra.mxu0 %v418
        %443 = vmatpush.bf16.msra.mxu0 %v416
        %444 = vmatpush.bf16.msra.mxu0 %v414
        %445 = vmatpush.bf16.msra.mxu0 %v412
        %446 = vmatpush.bf16.msra.mxu0 %v410
        %447 = vmatpush.bf16.msra.mxu0 %v408
        %448 = vmatmul.bf16.gmra.mxu0 %v343
        %v449 = vpop.f32.mrf.mxu0
        %v450 = vadd.f32 0.0, %v449
        %v451 = vpop.f32.mrf.mxu0
        %452 = vdwg.mxu0
        %453 = vmatpush.bf16.msra.mxu0 %v423
        %454 = vmatpush.bf16.msra.mxu0 %v421
        %455 = vmatpush.bf16.msra.mxu0 %v419
        %456 = vmatpush.bf16.msra.mxu0 %v417
        %457 = vmatpush.bf16.msra.mxu0 %v415
        %458 = vmatpush.bf16.msra.mxu0 %v413
        %459 = vmatpush.bf16.msra.mxu0 %v411
        %460 = vmatpush.bf16.msra.mxu0 %v409
        %461 = vmatmul.bf16.gmra.mxu0 %v343
        %v462 = vpop.f32.mrf.mxu0
        %v463 = vadd.f32 0.0, %v462
        %v464 = vpop.f32.mrf.mxu0
        %465 = vdwg.mxu0
        %466 = vst [vmem:[%s333] sm:$0xff] %v450
        %467 = vst [vmem:[%s333 + $0x8] sm:$0xff] %v463
        %p468 = scmp.eq.s32.totalorder %s21, 0
        // Predicated region
        $region67: #{double_conv_right.4} parent=61 // pred_check
          %p469 = pneg %p468
        $region68: #{double_conv_right.4} parent=61 // pred_check_branch
          %471 = sbr.rel (%p469) target = $region70
        $region69: #{double_conv_right.4} parent=61 // pred_region
          %472 = vst [vmem:[%s338] sm:$0xff] 0.0
          %473 = vst [vmem:[%s342] sm:$0xff] 0.0
        $region70: #{double_conv_right.4} parent=61 // pred_fallthru
          _
        %v474 = vadd.f32 %v450, %v463
        %475 = vadd.xlane.f32.xlu0 %v474
        %v476 = vpop.xlane.xlu0 %475
        %v477 = vmul.f32 %v450, %v450
        %v478 = vmul.f32 %v463, %v463
        %v479 = vadd.f32 %v477, %v478
        %480 = vadd.xlane.f32.xlu0 %v479
        %v481 = vpop.xlane.xlu0 %480
        %v482 = vld [vmem:[%s338] sm:$0xff]
        %v483 = vadd.f32 %v482, %v476
        %484 = vst [vmem:[%s338] sm:$0xff] %v483
        %v485 = vld [vmem:[%s342] sm:$0xff]
        %v486 = vadd.f32 %v485, %v481
        %487 = vst [vmem:[%s342] sm:$0xff] %v486
        %s488 = smul.u32 2, %s21
        %p489 = scmp.lt.s32.totalorder %s20, 1
        %s490 = scalar_select %p489, %s20, 1
        %p491 = scmp.lt.s32.totalorder %s488, 3
        %s492 = scalar_select %p491, %s488, 3
        %s493 = smul.addr %s490, 4
        %s494 = sadd.s32 %s492, %s493
        %s495 = smul.addr %s494, 8
        %s496 = scalar_lea.vmem %s2, %s495
        %p497 = scmp.lt.s32.totalorder %s20, 1
        %s498 = scalar_select %p497, %s20, 1
        %s499 = smul.addr %s498, 8
        %s500 = scalar_lea.vmem %s3, %s499
        %p501 = scmp.lt.s32.totalorder %s20, 1
        %s502 = scalar_select %p501, %s20, 1
        %s503 = smul.addr %s502, 8
        %s504 = scalar_lea.vmem %s4, %s503
        // Predicated region
        $region71: #{double_conv_right.4} parent=61 // pred_check
          %p505 = pneg %p97
        $region72: #{double_conv_right.4} parent=61 // pred_check_branch
          %507 = sbr.rel (%p505) target = $region74
        $region73: #{double_conv_right.4} parent=61 // pred_region
          %s508 = smul.u32 2, %s21
        $region74: #{double_conv_right.4} parent=61 // pred_fallthru
          _
        // Predicated region
        $region75: #{double_conv_right.4} parent=61 // pred_check
          %p509 = pneg %p123
        $region76: #{double_conv_right.4} parent=61 // pred_check_branch
          %511 = sbr.rel (%p509) target = $region78
        $region77: #{double_conv_right.4} parent=61 // pred_region
          _
        $region78: #{double_conv_right.4} parent=61 // pred_fallthru
          _
        // Predicated region
        $region79: #{double_conv_right.4} parent=61 // pred_check
          %p512 = pneg %p149
        $region80: #{double_conv_right.4} parent=61 // pred_check_branch
          %514 = sbr.rel (%p512) target = $region82
        $region81: #{double_conv_right.4} parent=61 // pred_region
          _
        $region82: #{double_conv_right.4} parent=61 // pred_fallthru
          _
      $region62: #{double_conv_right.4} parent=5 // pred_fallthru
        _
      %p515 = scmp.le.s32.totalorder 2, %s11
      // Predicated region
      $region83: #{double_conv_right.4} parent=5 // pred_check
        %p516 = pneg %p515
      $region84: #{double_conv_right.4} parent=5 // pred_check_branch
        %518 = sbr.rel (%p516) target = $region86
      $region85: #{double_conv_right.4} parent=5 // pred_region
        %s519 = ssub.s32 %s11, 2
        // Predicated region
        $region87: #{double_conv_right.4} parent=85 // pred_check
          %p520 = pneg %p103
        $region88: #{double_conv_right.4} parent=85 // pred_check_branch
          %522 = sbr.rel (%p520) target = $region90
        $region89: #{double_conv_right.4} parent=85 // pred_region
          %s523 = smul.u32 2, %s23
          %p524 = scmp.lt.s32.totalorder %s22, 1
          %s525 = scalar_select %p524, %s22, 1
          %p526 = scmp.lt.s32.totalorder %s523, 3
          %s527 = scalar_select %p526, %s523, 3
          %s528 = smul.addr %s525, 4
          %s529 = sadd.s32 %s527, %s528
          %s530 = smul.addr %s529, 8
          %s531 = scalar_lea.vmem %s2, %s530
        $region90: #{double_conv_right.4} parent=85 // pred_fallthru
          _
        // Predicated region
        $region91: #{double_conv_right.4} parent=85 // pred_check
          %p532 = pneg %p129
        $region92: #{double_conv_right.4} parent=85 // pred_check_branch
          %534 = sbr.rel (%p532) target = $region94
        $region93: #{double_conv_right.4} parent=85 // pred_region
          %p535 = scmp.lt.s32.totalorder %s22, 1
          %s536 = scalar_select %p535, %s22, 1
          %s537 = smul.addr %s536, 8
          %s538 = scalar_lea.vmem %s3, %s537
        $region94: #{double_conv_right.4} parent=85 // pred_fallthru
          _
        // Predicated region
        $region95: #{double_conv_right.4} parent=85 // pred_check
          %p539 = pneg %p155
        $region96: #{double_conv_right.4} parent=85 // pred_check_branch
          %541 = sbr.rel (%p539) target = $region98
        $region97: #{double_conv_right.4} parent=85 // pred_region
          %p542 = scmp.lt.s32.totalorder %s22, 1
          %s543 = scalar_select %p542, %s22, 1
          %s544 = smul.addr %s543, 8
          %s545 = scalar_lea.vmem %s4, %s544
        $region98: #{double_conv_right.4} parent=85 // pred_fallthru
          _
      $region86: #{double_conv_right.4} parent=5 // pred_fallthru
        _
    $region6: #{double_conv_right.4} parent=1 // loop_footer
      %s15 = sadd.s32 1, %s11
    $region7: #{double_conv_right.4} parent=1 // loop_footer_branch
      %10 = sbr.rel target = $region3
    $region8: #{double_conv_right.4} parent=1 // loop_exit
      _

// kernel: double_conv_right.5
$region0: #{double_conv_right.5}
  #allocation0 [shape = 'u32[]', space=smem, size = 0x4, offset = 0x4, fixed_abs, tag = 'smem constant byte address 0x4 - core index']
  #allocation1 [shape = 'u32[72,128]{1,0:T(1,128)}', space=vmem, size = 0x9000, scoped, tag = 'internal scratch']
  %s0 = inlined_call_operand.vmem [shape: f32[2,8,512], index: 0, kind: input, shape index: {}]
  %s1 = inlined_call_operand.vmem [shape: f32[8,1], index: 1, kind: input, shape index: {}]
  %s2 = inlined_call_operand.vmem [shape: f32[8,1], index: 2, kind: input, shape index: {}]
  %s3 = inlined_call_operand.vmem [shape: f32[2,8,512], index: 3, kind: output, shape index: {}]
  %s4 = sld [smem:[#allocation0]]
  $region45: #{double_conv_right.5} parent=0
    _
  %s6 = ssub.s32 1, %s4
  %s7 = scalar_select 0, %s6, %s4
  loop: start=0, step=1, limit=6
  $region2: #{double_conv_right.5} parent=0 // loop_pre_header
    _
  $region3: #{double_conv_right.5} parent=0 // loop_header
    %s9 = sphi 0, %s13
    %p10 = scmp.ge.s32.totalorder %s9, 6
    %s16 = sphi 0, %s28
    %s17 = sphi 0, %s24
    %s18 = sphi 0, %s16
    %s19 = sphi 0, %s17
    %s20 = sphi 0, %s18
    %s21 = sphi 0, %s19
    %s33 = sphi 0, %s35
    %s36 = sphi 0, %s33
    %s37 = sphi 0, %s36
    %s53 = sphi 0, %s37
    %s57 = sphi 0, %s57
    %s59 = sphi 0, %s57
    %s60 = sphi 0, %s59
    %s74 = sphi 0, %s60
    %s78 = sphi 0, %s78
    %s80 = sphi 0, %s78
    %s81 = sphi 0, %s80
    %s95 = sphi 0, %s81
    %s103 = sphi 0, %s105
    %s106 = sphi 0, %s103
    %s107 = sphi 0, %s106
    %s123 = sphi 0, %s107
  $region4: #{double_conv_right.5} parent=0 // loop_header_branch
    %12 = sbr.rel (%p10) target = $region8
  $region5: #{double_conv_right.5} parent=0 // loop_body
    %s14 = ssub.s32 %s9, 1
    %s15 = ssub.s32 %s9, 2
    %s22 = sadd.s32 1, %s17
    %p23 = scmp.ge.s32.totalorder %s22, 2
    %s24 = scalar_select %p23, 0, %s22
    %s25 = sadd.s32 1, %s16
    %s26 = scalar_select %p23, %s25, %s16
    %p27 = scmp.ge.s32.totalorder %s26, 2
    %s28 = scalar_select %p27, 0, %s26
    %s29 = ssub.s32 %s16, %s28
    %s30 = ssub.s32 %s17, %s24
    %s31 = sor.u32 %s29, %s30
    %p32 = scmp.eq.s32.totalorder %s31, 0
    %s34 = sadd.s32 %s33, 1
    %s35 = scalar_select %p32, %s33, %s34
    %p38 = pneg %p32
    %p39 = scmp.eq.s32.totalorder %s9, 3
    %p40 = por %p38, %p39
    %p41 = scmp.ne.s32.totalorder %s33, %s36
    %p42 = scmp.eq.s32.totalorder %s9, 0
    %p43 = por %p41, %p42
    %p44 = scmp.ne.s32.totalorder %s33, %s36
    %p45 = scmp.eq.s32.totalorder %s14, 3
    %p46 = por %p44, %p45
    %p47 = scmp.ne.s32.totalorder %s36, %s37
    %p48 = scmp.eq.s32.totalorder %s14, 0
    %p49 = por %p47, %p48
    %p50 = scmp.ne.s32.totalorder %s36, %s37
    %p51 = scmp.eq.s32.totalorder %s15, 3
    %p52 = por %p50, %p51
    %p54 = scmp.ne.s32.totalorder %s37, %s53
    %p55 = scmp.eq.s32.totalorder %s15, 0
    %p56 = por %p54, %p55
    %s58 = sadd.s32 %s57, 1
    %p61 = scmp.eq.s32.totalorder %s9, 3
    %p62 = scmp.ne.s32.totalorder %s57, %s59
    %p63 = scmp.eq.s32.totalorder %s9, 0
    %p64 = por %p62, %p63
    %p65 = scmp.ne.s32.totalorder %s57, %s59
    %p66 = scmp.eq.s32.totalorder %s14, 3
    %p67 = por %p65, %p66
    %p68 = scmp.ne.s32.totalorder %s59, %s60
    %p69 = scmp.eq.s32.totalorder %s14, 0
    %p70 = por %p68, %p69
    %p71 = scmp.ne.s32.totalorder %s59, %s60
    %p72 = scmp.eq.s32.totalorder %s15, 3
    %p73 = por %p71, %p72
    %p75 = scmp.ne.s32.totalorder %s60, %s74
    %p76 = scmp.eq.s32.totalorder %s15, 0
    %p77 = por %p75, %p76
    %s79 = sadd.s32 %s78, 1
    %p82 = scmp.eq.s32.totalorder %s9, 3
    %p83 = scmp.ne.s32.totalorder %s78, %s80
    %p84 = scmp.eq.s32.totalorder %s9, 0
    %p85 = por %p83, %p84
    %p86 = scmp.ne.s32.totalorder %s78, %s80
    %p87 = scmp.eq.s32.totalorder %s14, 3
    %p88 = por %p86, %p87
    %p89 = scmp.ne.s32.totalorder %s80, %s81
    %p90 = scmp.eq.s32.totalorder %s14, 0
    %p91 = por %p89, %p90
    %p92 = scmp.ne.s32.totalorder %s80, %s81
    %p93 = scmp.eq.s32.totalorder %s15, 3
    %p94 = por %p92, %p93
    %p96 = scmp.ne.s32.totalorder %s81, %s95
    %p97 = scmp.eq.s32.totalorder %s15, 0
    %p98 = por %p96, %p97
    %s99 = ssub.s32 %s16, %s28
    %s100 = ssub.s32 %s17, %s24
    %s101 = sor.u32 %s99, %s100
    %p102 = scmp.eq.s32.totalorder %s101, 0
    %s104 = sadd.s32 %s103, 1
    %s105 = scalar_select %p102, %s103, %s104
    %p108 = pneg %p102
    %p109 = scmp.eq.s32.totalorder %s9, 3
    %p110 = por %p108, %p109
    %p111 = scmp.ne.s32.totalorder %s103, %s106
    %p112 = scmp.eq.s32.totalorder %s9, 0
    %p113 = por %p111, %p112
    %p114 = scmp.ne.s32.totalorder %s103, %s106
    %p115 = scmp.eq.s32.totalorder %s14, 3
    %p116 = por %p114, %p115
    %p117 = scmp.ne.s32.totalorder %s106, %s107
    %p118 = scmp.eq.s32.totalorder %s14, 0
    %p119 = por %p117, %p118
    %p120 = scmp.ne.s32.totalorder %s106, %s107
    %p121 = scmp.eq.s32.totalorder %s15, 3
    %p122 = por %p120, %p121
    %p124 = scmp.ne.s32.totalorder %s107, %s123
    %p125 = scmp.eq.s32.totalorder %s15, 0
    %p126 = por %p124, %p125
    %p127 = scmp.le.s32.totalorder 1, %s9
    %p128 = scmp.lt.s32.totalorder %s9, 5
    %p129 = pnand %p127, %p128
    %p130 = pneg %p129
    // Predicated region
    $region9: #{double_conv_right.5} parent=5 // pred_check
      _
    $region10: #{double_conv_right.5} parent=5 // pred_check_branch
      %132 = sbr.rel (%p129) target = $region12
    $region11: #{double_conv_right.5} parent=5 // pred_region
      %s133 = ssub.s32 %s9, 1
      // Predicated region
      $region13: #{double_conv_right.5} parent=11 // pred_check
        %p134 = pneg %p70
      $region14: #{double_conv_right.5} parent=11 // pred_check_branch
        %136 = sbr.rel (%p134) target = $region16
      $region15: #{double_conv_right.5} parent=11 // pred_region
        _
      $region16: #{double_conv_right.5} parent=11 // pred_fallthru
        _
      // Predicated region
      $region17: #{double_conv_right.5} parent=11 // pred_check
        %p137 = pneg %p91
      $region18: #{double_conv_right.5} parent=11 // pred_check_branch
        %139 = sbr.rel (%p137) target = $region20
      $region19: #{double_conv_right.5} parent=11 // pred_region
        _
      $region20: #{double_conv_right.5} parent=11 // pred_fallthru
        _
    $region12: #{double_conv_right.5} parent=5 // pred_fallthru
      _
    %p140 = scmp.lt.s32.totalorder %s9, 4
    // Predicated region
    $region21: #{double_conv_right.5} parent=5 // pred_check
      %p141 = pneg %p140
    $region22: #{double_conv_right.5} parent=5 // pred_check_branch
      %143 = sbr.rel (%p141) target = $region24
    $region23: #{double_conv_right.5} parent=5 // pred_region
      // Predicated region
      $region25: #{double_conv_right.5} parent=23 // pred_check
        %p144 = pneg %p43
      $region26: #{double_conv_right.5} parent=23 // pred_check_branch
        %146 = sbr.rel (%p144) target = $region28
      $region27: #{double_conv_right.5} parent=23 // pred_region
        %s147 = smul.u32 2, %s17
        %p148 = scmp.lt.s32.totalorder %s16, 1
        %s149 = scalar_select %p148, %s16, 1
        %p150 = scmp.lt.s32.totalorder %s147, 3
        %s151 = scalar_select %p150, %s147, 3
        %s152 = smul.addr %s149, 4
        %s153 = sadd.s32 %s151, %s152
        %s154 = smul.addr %s153, 8
        %s155 = scalar_lea.vmem %s0, %s154
        %s156 = smul.u32 2, %s17
      $region28: #{double_conv_right.5} parent=23 // pred_fallthru
        _
    $region24: #{double_conv_right.5} parent=5 // pred_fallthru
      _
    %p157 = scmp.le.s32.totalorder 1, %s9
    %p158 = scmp.lt.s32.totalorder %s9, 5
    %p159 = pnand %p157, %p158
    %p160 = pneg %p159
    // Predicated region
    $region29: #{double_conv_right.5} parent=5 // pred_check
      _
    $region30: #{double_conv_right.5} parent=5 // pred_check_branch
      %162 = sbr.rel (%p159) target = $region32
    $region31: #{double_conv_right.5} parent=5 // pred_region
      %s163 = ssub.s32 %s9, 1
      %s164 = smul.u32 2, %s19
      %p165 = scmp.lt.s32.totalorder %s18, 1
      %s166 = scalar_select %p165, %s18, 1
      %p167 = scmp.lt.s32.totalorder %s164, 3
      %s168 = scalar_select %p167, %s164, 3
      %s169 = smul.addr %s166, 4
      %s170 = sadd.s32 %s168, %s169
      %s171 = smul.addr %s170, 8
      %s172 = scalar_lea.vmem %s0, %s171
      %p173 = pneg %p49
      %p174 = pneg %p46
      %p175 = pneg %p70
      %p176 = pneg %p67
      %p177 = pneg %p91
      %p178 = pneg %p88
      %p179 = pneg %p119
      %p180 = pneg %p116
      %s181 = smul.u32 2, %s19
      %p182 = scmp.lt.s32.totalorder %s18, 1
      %s183 = scalar_select %p182, %s18, 1
      %p184 = scmp.lt.s32.totalorder %s181, 3
      %s185 = scalar_select %p184, %s181, 3
      %s186 = smul.addr %s183, 4
      %s187 = sadd.s32 %s185, %s186
      %s188 = smul.addr %s187, 8
      %s189 = scalar_lea.vmem %s3, %s188
      %s190 = smul.u32 2, %s19
      %p191 = scmp.lt.s32.totalorder %s18, 1
      %s192 = scalar_select %p191, %s18, 1
      %p193 = scmp.lt.s32.totalorder %s190, 3
      %s194 = scalar_select %p193, %s190, 3
      %s195 = smul.addr %s192, 4
      %s196 = sadd.s32 %s194, %s195
      %s197 = smul.addr %s196, 8
      %s198 = scalar_lea.vmem %s0, %s197
      %s199 = smul.u32 2, %s19
      %s200 = smul.u32 2, %s19
      %p201 = scmp.lt.s32.totalorder %s18, 1
      %s202 = scalar_select %p201, %s18, 1
      %p203 = scmp.lt.s32.totalorder %s200, 3
      %s204 = scalar_select %p203, %s200, 3
      %s205 = smul.addr %s202, 4
      %s206 = sadd.s32 %s204, %s205
      %s207 = smul.addr %s206, 8
      %s208 = scalar_lea.vmem %s3, %s207
      %s209 = smul.u32 2, %s19
      %v210 = vld [vmem:[%s198] sm:$0xff]
      %v211 = vld [vmem:[%s198 + $0x8] sm:$0xff]
      %v212 = vld [vmem:[%s1] sm:$0xff]
      %214 = vset.pattern.permute.xlu0 0
      %215 = vperm.xlu0 %214, %v212
      %v216 = vpop.permute.xlu0 %215
      %v218 = vmul.f32 %v210, %v216
      %v219 = vmul.f32 %v211, %v216
      %v220 = vld [vmem:[%s2] sm:$0xff]
      %222 = vset.pattern.permute.xlu0 0
      %223 = vperm.xlu0 %222, %v220
      %v224 = vpop.permute.xlu0 %223
      %v226 = vadd.f32 %v218, %v224
      %v227 = vadd.f32 %v219, %v224
      %v228 = vmax.f32 %v226, 0.0
      %v229 = vmax.f32 %v227, 0.0
      %230 = vst [vmem:[%s208] sm:$0xff] %v228
      %231 = vst [vmem:[%s208 + $0x8] sm:$0xff] %v229
      %s232 = smul.u32 2, %s19
      %p233 = scmp.lt.s32.totalorder %s18, 1
      %s234 = scalar_select %p233, %s18, 1
      %p235 = scmp.lt.s32.totalorder %s232, 3
      %s236 = scalar_select %p235, %s232, 3
      %s237 = smul.addr %s234, 4
      %s238 = sadd.s32 %s236, %s237
      %s239 = smul.addr %s238, 8
      %s240 = scalar_lea.vmem %s3, %s239
      // Predicated region
      $region33: #{double_conv_right.5} parent=31 // pred_check
        %p241 = pneg %p116
      $region34: #{double_conv_right.5} parent=31 // pred_check_branch
        %243 = sbr.rel (%p241) target = $region36
      $region35: #{double_conv_right.5} parent=31 // pred_region
        %s244 = smul.u32 2, %s19
      $region36: #{double_conv_right.5} parent=31 // pred_fallthru
        _
    $region32: #{double_conv_right.5} parent=5 // pred_fallthru
      _
    %p245 = scmp.le.s32.totalorder 2, %s9
    // Predicated region
    $region37: #{double_conv_right.5} parent=5 // pred_check
      %p246 = pneg %p245
    $region38: #{double_conv_right.5} parent=5 // pred_check_branch
      %248 = sbr.rel (%p246) target = $region40
    $region39: #{double_conv_right.5} parent=5 // pred_region
      %s249 = ssub.s32 %s9, 2
      // Predicated region
      $region41: #{double_conv_right.5} parent=39 // pred_check
        %p250 = pneg %p122
      $region42: #{double_conv_right.5} parent=39 // pred_check_branch
        %252 = sbr.rel (%p250) target = $region44
      $region43: #{double_conv_right.5} parent=39 // pred_region
        %s253 = smul.u32 2, %s21
        %p254 = scmp.lt.s32.totalorder %s20, 1
        %s255 = scalar_select %p254, %s20, 1
        %p256 = scmp.lt.s32.totalorder %s253, 3
        %s257 = scalar_select %p256, %s253, 3
        %s258 = smul.addr %s255, 4
        %s259 = sadd.s32 %s257, %s258
        %s260 = smul.addr %s259, 8
        %s261 = scalar_lea.vmem %s3, %s260
      $region44: #{double_conv_right.5} parent=39 // pred_fallthru
        _
    $region40: #{double_conv_right.5} parent=5 // pred_fallthru
      _
  $region6: #{double_conv_right.5} parent=0 // loop_footer
    %s13 = sadd.s32 1, %s9
  $region7: #{double_conv_right.5} parent=0 // loop_footer_branch
    %8 = sbr.rel target = $region3
  $region8: #{double_conv_right.5} parent=0 // loop_exit
    _

// kernel: double_conv_right.6
$region0: #{double_conv_right.6}
  #allocation0 [shape = 'u32[]', space=smem, size = 0x4, offset = 0x4, fixed_abs, tag = 'smem constant byte address 0x4 - core index']
  #allocation1 [shape = 'u32[72,128]{1,0:T(1,128)}', space=vmem, size = 0x9000, scoped, tag = 'internal scratch']
  %s0 = inlined_call_operand.vmem [shape: bf16[2,256,512], index: 0, kind: input, shape index: {}]
  %s1 = inlined_call_operand.vmem [shape: bf16[8,256], index: 1, kind: input, shape index: {}]
  %s2 = inlined_call_operand.vmem [shape: f32[2,8,512], index: 2, kind: output, shape index: {0}]
  %s3 = inlined_call_operand.vmem [shape: f32[2,8,128], index: 3, kind: output, shape index: {1}]
  %s4 = inlined_call_operand.vmem [shape: f32[2,8,128], index: 4, kind: output, shape index: {2}]
  %5 = xla_tuple %s2, %s3, %s4
  %s6 = sld [smem:[#allocation0]]
  $region99: #{double_conv_right.6} parent=0
    _
  %s8 = ssub.s32 1, %s6
  %s9 = scalar_select 0, %s8, %s6
  $region1: #{double_conv_right.6} parent=0
    #allocation2 [shape = 'u8[262144]{0}', space=vmem, size = 0x40000, scoped, tag = 'input window, operand 0']
    loop: start=0, step=1, limit=6
    $region2: #{double_conv_right.6} parent=1 // loop_pre_header
      _
    $region3: #{double_conv_right.6} parent=1 // loop_header
      %s11 = sphi 0, %s15
      %p12 = scmp.ge.s32.totalorder %s11, 6
      %s18 = sphi 0, %s30
      %s19 = sphi 0, %s26
      %s20 = sphi 0, %s18
      %s21 = sphi 0, %s19
      %s22 = sphi 0, %s20
      %s23 = sphi 0, %s21
      %s35 = sphi 0, %s37
      %s38 = sphi 0, %s35
      %s39 = sphi 0, %s38
      %s55 = sphi 0, %s39
      %s59 = sphi 0, %s59
      %s61 = sphi 0, %s59
      %s62 = sphi 0, %s61
      %s76 = sphi 0, %s62
      %s84 = sphi 0, %s86
      %s87 = sphi 0, %s84
      %s88 = sphi 0, %s87
      %s104 = sphi 0, %s88
      %s110 = sphi 0, %s112
      %s113 = sphi 0, %s110
      %s114 = sphi 0, %s113
      %s130 = sphi 0, %s114
      %s136 = sphi 0, %s138
      %s139 = sphi 0, %s136
      %s140 = sphi 0, %s139
      %s156 = sphi 0, %s140
    $region4: #{double_conv_right.6} parent=1 // loop_header_branch
      %14 = sbr.rel (%p12) target = $region8
    $region5: #{double_conv_right.6} parent=1 // loop_body
      %s16 = ssub.s32 %s11, 1
      %s17 = ssub.s32 %s11, 2
      %s24 = sadd.s32 1, %s19
      %p25 = scmp.ge.s32.totalorder %s24, 2
      %s26 = scalar_select %p25, 0, %s24
      %s27 = sadd.s32 1, %s18
      %s28 = scalar_select %p25, %s27, %s18
      %p29 = scmp.ge.s32.totalorder %s28, 2
      %s30 = scalar_select %p29, 0, %s28
      %s31 = ssub.s32 %s18, %s30
      %s32 = ssub.s32 %s19, %s26
      %s33 = sor.u32 %s31, %s32
      %p34 = scmp.eq.s32.totalorder %s33, 0
      %s36 = sadd.s32 %s35, 1
      %s37 = scalar_select %p34, %s35, %s36
      %p40 = pneg %p34
      %p41 = scmp.eq.s32.totalorder %s11, 3
      %p42 = por %p40, %p41
      %p43 = scmp.ne.s32.totalorder %s35, %s38
      %p44 = scmp.eq.s32.totalorder %s11, 0
      %p45 = por %p43, %p44
      %p46 = scmp.ne.s32.totalorder %s35, %s38
      %p47 = scmp.eq.s32.totalorder %s16, 3
      %p48 = por %p46, %p47
      %p49 = scmp.ne.s32.totalorder %s38, %s39
      %p50 = scmp.eq.s32.totalorder %s16, 0
      %p51 = por %p49, %p50
      %p52 = scmp.ne.s32.totalorder %s38, %s39
      %p53 = scmp.eq.s32.totalorder %s17, 3
      %p54 = por %p52, %p53
      %p56 = scmp.ne.s32.totalorder %s39, %s55
      %p57 = scmp.eq.s32.totalorder %s17, 0
      %p58 = por %p56, %p57
      %s60 = sadd.s32 %s59, 1
      %p63 = scmp.eq.s32.totalorder %s11, 3
      %p64 = scmp.ne.s32.totalorder %s59, %s61
      %p65 = scmp.eq.s32.totalorder %s11, 0
      %p66 = por %p64, %p65
      %p67 = scmp.ne.s32.totalorder %s59, %s61
      %p68 = scmp.eq.s32.totalorder %s16, 3
      %p69 = por %p67, %p68
      %p70 = scmp.ne.s32.totalorder %s61, %s62
      %p71 = scmp.eq.s32.totalorder %s16, 0
      %p72 = por %p70, %p71
      %p73 = scmp.ne.s32.totalorder %s61, %s62
      %p74 = scmp.eq.s32.totalorder %s17, 3
      %p75 = por %p73, %p74
      %p77 = scmp.ne.s32.totalorder %s62, %s76
      %p78 = scmp.eq.s32.totalorder %s17, 0
      %p79 = por %p77, %p78
      %s80 = ssub.s32 %s18, %s30
      %s81 = ssub.s32 %s19, %s26
      %s82 = sor.u32 %s80, %s81
      %p83 = scmp.eq.s32.totalorder %s82, 0
      %s85 = sadd.s32 %s84, 1
      %s86 = scalar_select %p83, %s84, %s85
      %p89 = pneg %p83
      %p90 = scmp.eq.s32.totalorder %s11, 3
      %p91 = por %p89, %p90
      %p92 = scmp.ne.s32.totalorder %s84, %s87
      %p93 = scmp.eq.s32.totalorder %s11, 0
      %p94 = por %p92, %p93
      %p95 = scmp.ne.s32.totalorder %s84, %s87
      %p96 = scmp.eq.s32.totalorder %s16, 3
      %p97 = por %p95, %p96
      %p98 = scmp.ne.s32.totalorder %s87, %s88
      %p99 = scmp.eq.s32.totalorder %s16, 0
      %p100 = por %p98, %p99
      %p101 = scmp.ne.s32.totalorder %s87, %s88
      %p102 = scmp.eq.s32.totalorder %s17, 3
      %p103 = por %p101, %p102
      %p105 = scmp.ne.s32.totalorder %s88, %s104
      %p106 = scmp.eq.s32.totalorder %s17, 0
      %p107 = por %p105, %p106
      %s108 = ssub.s32 %s18, %s30
      %p109 = scmp.eq.s32.totalorder %s108, 0
      %s111 = sadd.s32 %s110, 1
      %s112 = scalar_select %p109, %s110, %s111
      %p115 = pneg %p109
      %p116 = scmp.eq.s32.totalorder %s11, 3
      %p117 = por %p115, %p116
      %p118 = scmp.ne.s32.totalorder %s110, %s113
      %p119 = scmp.eq.s32.totalorder %s11, 0
      %p120 = por %p118, %p119
      %p121 = scmp.ne.s32.totalorder %s110, %s113
      %p122 = scmp.eq.s32.totalorder %s16, 3
      %p123 = por %p121, %p122
      %p124 = scmp.ne.s32.totalorder %s113, %s114
      %p125 = scmp.eq.s32.totalorder %s16, 0
      %p126 = por %p124, %p125
      %p127 = scmp.ne.s32.totalorder %s113, %s114
      %p128 = scmp.eq.s32.totalorder %s17, 3
      %p129 = por %p127, %p128
      %p131 = scmp.ne.s32.totalorder %s114, %s130
      %p132 = scmp.eq.s32.totalorder %s17, 0
      %p133 = por %p131, %p132
      %s134 = ssub.s32 %s18, %s30
      %p135 = scmp.eq.s32.totalorder %s134, 0
      %s137 = sadd.s32 %s136, 1
      %s138 = scalar_select %p135, %s136, %s137
      %p141 = pneg %p135
      %p142 = scmp.eq.s32.totalorder %s11, 3
      %p143 = por %p141, %p142
      %p144 = scmp.ne.s32.totalorder %s136, %s139
      %p145 = scmp.eq.s32.totalorder %s11, 0
      %p146 = por %p144, %p145
      %p147 = scmp.ne.s32.totalorder %s136, %s139
      %p148 = scmp.eq.s32.totalorder %s16, 3
      %p149 = por %p147, %p148
      %p150 = scmp.ne.s32.totalorder %s139, %s140
      %p151 = scmp.eq.s32.totalorder %s16, 0
      %p152 = por %p150, %p151
      %p153 = scmp.ne.s32.totalorder %s139, %s140
      %p154 = scmp.eq.s32.totalorder %s17, 3
      %p155 = por %p153, %p154
      %p157 = scmp.ne.s32.totalorder %s140, %s156
      %p158 = scmp.eq.s32.totalorder %s17, 0
      %p159 = por %p157, %p158
      %p160 = scmp.le.s32.totalorder 1, %s11
      %p161 = scmp.lt.s32.totalorder %s11, 5
      %p162 = pnand %p160, %p161
      %p163 = pneg %p162
      // Predicated region
      $region9: #{double_conv_right.6} parent=5 // pred_check
        _
      $region10: #{double_conv_right.6} parent=5 // pred_check_branch
        %165 = sbr.rel (%p162) target = $region12
      $region11: #{double_conv_right.6} parent=5 // pred_region
        %s166 = ssub.s32 %s11, 1
        // Predicated region
        $region13: #{double_conv_right.6} parent=11 // pred_check
          %p167 = pneg %p72
        $region14: #{double_conv_right.6} parent=11 // pred_check_branch
          %169 = sbr.rel (%p167) target = $region16
        $region15: #{double_conv_right.6} parent=11 // pred_region
          _
        $region16: #{double_conv_right.6} parent=11 // pred_fallthru
          _
      $region12: #{double_conv_right.6} parent=5 // pred_fallthru
        _
      %p170 = scmp.lt.s32.totalorder %s11, 4
      // Predicated region
      $region17: #{double_conv_right.6} parent=5 // pred_check
        %p171 = pneg %p170
      $region18: #{double_conv_right.6} parent=5 // pred_check_branch
        %173 = sbr.rel (%p171) target = $region20
      $region19: #{double_conv_right.6} parent=5 // pred_region
        // Predicated region
        $region21: #{double_conv_right.6} parent=19 // pred_check
          %p174 = pneg %p45
        $region22: #{double_conv_right.6} parent=19 // pred_check_branch
          %176 = sbr.rel (%p174) target = $region24
        $region23: #{double_conv_right.6} parent=19 // pred_region
          %s177 = sand.u32 %s35, 1
          %s178 = sand.u32 %s35, 1
          %s179 = smul.addr %s178, 256
          %s180 = scalar_lea.vmem [#allocation2], %s179
          %s181 = smul.u32 2, %s19
          %s182 = smul.addr %s18, 128
          %s183 = sadd.s32 %s181, %s182
          %s184 = smul.addr %s183, 4
          %s185 = scalar_lea.vmem %s0, %s184
          // Predicated region
          $region25: #{double_conv_right.6} parent=23 // pred_check
            _
          $region26: #{double_conv_right.6} parent=23 // pred_check_branch
            %187 = sbr.rel (0) target = $region28
          $region27: #{double_conv_right.6} parent=23 // pred_region
            // Predicated region
            $region29: #{double_conv_right.6} parent=27 // pred_check
              _
            $region30: #{double_conv_right.6} parent=27 // pred_check_branch
              %189 = sbr.rel (0) target = $region32
            $region31: #{double_conv_right.6} parent=27 // pred_region
              // Predicated region
              $region44: #{double_conv_right.6} parent=31 // pred_check
                _
              $region45: #{double_conv_right.6} parent=31 // pred_check_branch
                %267 = sbr.rel (0) target = $region47
              $region46: #{double_conv_right.6} parent=31 // pred_region
                loop: start=0, step=1, limit=1
                $region48: #{double_conv_right.6} parent=46 // loop_pre_header
                  _
                $region49: #{double_conv_right.6} parent=46 // loop_header
                  %s269 = sphi 0, %s273
                  %p270 = scmp.ge.s32.totalorder %s269, 1
                  %s274 = sphi %s185, %s185
                  %s275 = sphi %s180, %s180
                $region50: #{double_conv_right.6} parent=46 // loop_header_branch
                  %272 = sbr.rel (%p270) target = $region54
                $region51: #{double_conv_right.6} parent=46 // loop_body
                  %v276 = vld [vmem:[%s274] sm:$0xff]
                  %277 = vst [vmem:[%s275] sm:$0xff] %v276
                  %v278 = vld [vmem:[%s274 + $0x10] sm:$0xff]
                  %279 = vst [vmem:[%s275 + $0x8] sm:$0xff] %v278
                  %v280 = vld [vmem:[%s274 + $0x20] sm:$0xff]
                  %281 = vst [vmem:[%s275 + $0x10] sm:$0xff] %v280
                  %v282 = vld [vmem:[%s274 + $0x30] sm:$0xff]
                  %283 = vst [vmem:[%s275 + $0x18] sm:$0xff] %v282
                  %v284 = vld [vmem:[%s274 + $0x40] sm:$0xff]
                  %285 = vst [vmem:[%s275 + $0x20] sm:$0xff] %v284
                  %v286 = vld [vmem:[%s274 + $0x50] sm:$0xff]
                  %287 = vst [vmem:[%s275 + $0x28] sm:$0xff] %v286
                  %v288 = vld [vmem:[%s274 + $0x60] sm:$0xff]
                  %289 = vst [vmem:[%s275 + $0x30] sm:$0xff] %v288
                  %v290 = vld [vmem:[%s274 + $0x70] sm:$0xff]
                  %291 = vst [vmem:[%s275 + $0x38] sm:$0xff] %v290
                  %v292 = vld [vmem:[%s274 + $0x80] sm:$0xff]
                  %293 = vst [vmem:[%s275 + $0x40] sm:$0xff] %v292
                  %v294 = vld [vmem:[%s274 + $0x90] sm:$0xff]
                  %295 = vst [vmem:[%s275 + $0x48] sm:$0xff] %v294
                  %v296 = vld [vmem:[%s274 + $0xa0] sm:$0xff]
                  %297 = vst [vmem:[%s275 + $0x50] sm:$0xff] %v296
                  %v298 = vld [vmem:[%s274 + $0xb0] sm:$0xff]
                  %299 = vst [vmem:[%s275 + $0x58] sm:$0xff] %v298
                  %v300 = vld [vmem:[%s274 + $0xc0] sm:$0xff]
                  %301 = vst [vmem:[%s275 + $0x60] sm:$0xff] %v300
                  %v302 = vld [vmem:[%s274 + $0xd0] sm:$0xff]
                  %303 = vst [vmem:[%s275 + $0x68] sm:$0xff] %v302
                  %v304 = vld [vmem:[%s274 + $0xe0] sm:$0xff]
                  %305 = vst [vmem:[%s275 + $0x70] sm:$0xff] %v304
                  %v306 = vld [vmem:[%s274 + $0xf0] sm:$0xff]
                  %307 = vst [vmem:[%s275 + $0x78] sm:$0xff] %v306
                  %v308 = vld [vmem:[%s274 + $0x100] sm:$0xff]
                  %309 = vst [vmem:[%s275 + $0x80] sm:$0xff] %v308
                  %v310 = vld [vmem:[%s274 + $0x110] sm:$0xff]
                  %311 = vst [vmem:[%s275 + $0x88] sm:$0xff] %v310
                  %v312 = vld [vmem:[%s274 + $0x120] sm:$0xff]
                  %313 = vst [vmem:[%s275 + $0x90] sm:$0xff] %v312
                  %v314 = vld [vmem:[%s274 + $0x130] sm:$0xff]
                  %315 = vst [vmem:[%s275 + $0x98] sm:$0xff] %v314
                  %v316 = vld [vmem:[%s274 + $0x140] sm:$0xff]
                  %317 = vst [vmem:[%s275 + $0xa0] sm:$0xff] %v316
                  %v318 = vld [vmem:[%s274 + $0x150] sm:$0xff]
                  %319 = vst [vmem:[%s275 + $0xa8] sm:$0xff] %v318
                  %v320 = vld [vmem:[%s274 + $0x160] sm:$0xff]
                  %321 = vst [vmem:[%s275 + $0xb0] sm:$0xff] %v320
                  %v322 = vld [vmem:[%s274 + $0x170] sm:$0xff]
                  %323 = vst [vmem:[%s275 + $0xb8] sm:$0xff] %v322
                  %v324 = vld [vmem:[%s274 + $0x180] sm:$0xff]
                  %325 = vst [vmem:[%s275 + $0xc0] sm:$0xff] %v324
                  %v326 = vld [vmem:[%s274 + $0x190] sm:$0xff]
                  %327 = vst [vmem:[%s275 + $0xc8] sm:$0xff] %v326
                  %v328 = vld [vmem:[%s274 + $0x1a0] sm:$0xff]
                  %329 = vst [vmem:[%s275 + $0xd0] sm:$0xff] %v328
                  %v330 = vld [vmem:[%s274 + $0x1b0] sm:$0xff]
                  %331 = vst [vmem:[%s275 + $0xd8] sm:$0xff] %v330
                  %v332 = vld [vmem:[%s274 + $0x1c0] sm:$0xff]
                  %333 = vst [vmem:[%s275 + $0xe0] sm:$0xff] %v332
                  %v334 = vld [vmem:[%s274 + $0x1d0] sm:$0xff]
                  %335 = vst [vmem:[%s275 + $0xe8] sm:$0xff] %v334
                  %v336 = vld [vmem:[%s274 + $0x1e0] sm:$0xff]
                  %337 = vst [vmem:[%s275 + $0xf0] sm:$0xff] %v336
                  %v338 = vld [vmem:[%s274 + $0x1f0] sm:$0xff]
                  %339 = vst [vmem:[%s275 + $0xf8] sm:$0xff] %v338
                $region52: #{double_conv_right.6} parent=46 // loop_footer
                  %s273 = sadd.s32 1, %s269
                $region53: #{double_conv_right.6} parent=46 // loop_footer_branch
                  %268 = sbr.rel target = $region49
                $region54: #{double_conv_right.6} parent=46 // loop_exit
                  _
              $region47: #{double_conv_right.6} parent=31 // pred_fallthru
                _
              // Predicated region
              $region55: #{double_conv_right.6} parent=31 // pred_check
                _
              $region56: #{double_conv_right.6} parent=31 // pred_check_branch
                %341 = sbr.rel target = $region58
              $region57: #{double_conv_right.6} parent=31 // pred_region
                _
              $region58: #{double_conv_right.6} parent=31 // pred_fallthru
                _
            $region32: #{double_conv_right.6} parent=27 // pred_fallthru
              _
            // Predicated region
            $region33: #{double_conv_right.6} parent=27 // pred_check
              _
            $region34: #{double_conv_right.6} parent=27 // pred_check_branch
              %191 = sbr.rel target = $region36
            $region35: #{double_conv_right.6} parent=27 // pred_region
              %s193 = ssub.s32 256, 1
              loop: start=0, step=1, limit=1
              $region37: #{double_conv_right.6} parent=35 // loop_pre_header
                _
              $region38: #{double_conv_right.6} parent=35 // loop_header
                %s195 = sphi 0, %s199
                %p196 = scmp.ge.s32.totalorder %s195, 1
                %s200 = sphi %s185, %s185
                %s201 = sphi %s180, %s180
              $region39: #{double_conv_right.6} parent=35 // loop_header_branch
                %198 = sbr.rel (%p196) target = $region43
              $region40: #{double_conv_right.6} parent=35 // loop_body
                %v202 = vld [vmem:[%s200] sm:%s193]
                %203 = vst [vmem:[%s201] sm:%s193] %v202
                %v204 = vld [vmem:[%s200 + $0x10] sm:%s193]
                %205 = vst [vmem:[%s201 + $0x8] sm:%s193] %v204
                %v206 = vld [vmem:[%s200 + $0x20] sm:%s193]
                %207 = vst [vmem:[%s201 + $0x10] sm:%s193] %v206
                %v208 = vld [vmem:[%s200 + $0x30] sm:%s193]
                %209 = vst [vmem:[%s201 + $0x18] sm:%s193] %v208
                %v210 = vld [vmem:[%s200 + $0x40] sm:%s193]
                %211 = vst [vmem:[%s201 + $0x20] sm:%s193] %v210
                %v212 = vld [vmem:[%s200 + $0x50] sm:%s193]
                %213 = vst [vmem:[%s201 + $0x28] sm:%s193] %v212
                %v214 = vld [vmem:[%s200 + $0x60] sm:%s193]
                %215 = vst [vmem:[%s201 + $0x30] sm:%s193] %v214
                %v216 = vld [vmem:[%s200 + $0x70] sm:%s193]
                %217 = vst [vmem:[%s201 + $0x38] sm:%s193] %v216
                %v218 = vld [vmem:[%s200 + $0x80] sm:%s193]
                %219 = vst [vmem:[%s201 + $0x40] sm:%s193] %v218
                %v220 = vld [vmem:[%s200 + $0x90] sm:%s193]
                %221 = vst [vmem:[%s201 + $0x48] sm:%s193] %v220
                %v222 = vld [vmem:[%s200 + $0xa0] sm:%s193]
                %223 = vst [vmem:[%s201 + $0x50] sm:%s193] %v222
                %v224 = vld [vmem:[%s200 + $0xb0] sm:%s193]
                %225 = vst [vmem:[%s201 + $0x58] sm:%s193] %v224
                %v226 = vld [vmem:[%s200 + $0xc0] sm:%s193]
                %227 = vst [vmem:[%s201 + $0x60] sm:%s193] %v226
                %v228 = vld [vmem:[%s200 + $0xd0] sm:%s193]
                %229 = vst [vmem:[%s201 + $0x68] sm:%s193] %v228
                %v230 = vld [vmem:[%s200 + $0xe0] sm:%s193]
                %231 = vst [vmem:[%s201 + $0x70] sm:%s193] %v230
                %v232 = vld [vmem:[%s200 + $0xf0] sm:%s193]
                %233 = vst [vmem:[%s201 + $0x78] sm:%s193] %v232
                %v234 = vld [vmem:[%s200 + $0x100] sm:%s193]
                %235 = vst [vmem:[%s201 + $0x80] sm:%s193] %v234
                %v236 = vld [vmem:[%s200 + $0x110] sm:%s193]
                %237 = vst [vmem:[%s201 + $0x88] sm:%s193] %v236
                %v238 = vld [vmem:[%s200 + $0x120] sm:%s193]
                %239 = vst [vmem:[%s201 + $0x90] sm:%s193] %v238
                %v240 = vld [vmem:[%s200 + $0x130] sm:%s193]
                %241 = vst [vmem:[%s201 + $0x98] sm:%s193] %v240
                %v242 = vld [vmem:[%s200 + $0x140] sm:%s193]
                %243 = vst [vmem:[%s201 + $0xa0] sm:%s193] %v242
                %v244 = vld [vmem:[%s200 + $0x150] sm:%s193]
                %245 = vst [vmem:[%s201 + $0xa8] sm:%s193] %v244
                %v246 = vld [vmem:[%s200 + $0x160] sm:%s193]
                %247 = vst [vmem:[%s201 + $0xb0] sm:%s193] %v246
                %v248 = vld [vmem:[%s200 + $0x170] sm:%s193]
                %249 = vst [vmem:[%s201 + $0xb8] sm:%s193] %v248
                %v250 = vld [vmem:[%s200 + $0x180] sm:%s193]
                %251 = vst [vmem:[%s201 + $0xc0] sm:%s193] %v250
                %v252 = vld [vmem:[%s200 + $0x190] sm:%s193]
                %253 = vst [vmem:[%s201 + $0xc8] sm:%s193] %v252
                %v254 = vld [vmem:[%s200 + $0x1a0] sm:%s193]
                %255 = vst [vmem:[%s201 + $0xd0] sm:%s193] %v254
                %v256 = vld [vmem:[%s200 + $0x1b0] sm:%s193]
                %257 = vst [vmem:[%s201 + $0xd8] sm:%s193] %v256
                %v258 = vld [vmem:[%s200 + $0x1c0] sm:%s193]
                %259 = vst [vmem:[%s201 + $0xe0] sm:%s193] %v258
                %v260 = vld [vmem:[%s200 + $0x1d0] sm:%s193]
                %261 = vst [vmem:[%s201 + $0xe8] sm:%s193] %v260
                %v262 = vld [vmem:[%s200 + $0x1e0] sm:%s193]
                %263 = vst [vmem:[%s201 + $0xf0] sm:%s193] %v262
                %v264 = vld [vmem:[%s200 + $0x1f0] sm:%s193]
                %265 = vst [vmem:[%s201 + $0xf8] sm:%s193] %v264
              $region41: #{double_conv_right.6} parent=35 // loop_footer
                %s199 = sadd.s32 1, %s195
              $region42: #{double_conv_right.6} parent=35 // loop_footer_branch
                %194 = sbr.rel target = $region38
              $region43: #{double_conv_right.6} parent=35 // loop_exit
                _
            $region36: #{double_conv_right.6} parent=27 // pred_fallthru
              _
          $region28: #{double_conv_right.6} parent=23 // pred_fallthru
            _
          %342 = vnop
        $region24: #{double_conv_right.6} parent=19 // pred_fallthru
          _
      $region20: #{double_conv_right.6} parent=5 // pred_fallthru
        _
      %p343 = scmp.le.s32.totalorder 1, %s11
      %p344 = scmp.lt.s32.totalorder %s11, 5
      %p345 = pnand %p343, %p344
      %p346 = pneg %p345
      // Predicated region
      $region59: #{double_conv_right.6} parent=5 // pred_check
        _
      $region60: #{double_conv_right.6} parent=5 // pred_check_branch
        %348 = sbr.rel (%p345) target = $region62
      $region61: #{double_conv_right.6} parent=5 // pred_region
        %s349 = ssub.s32 %s11, 1
        %s350 = sand.u32 %s38, 1
        %s351 = sand.u32 %s38, 1
        %s352 = smul.addr %s351, 256
        %s353 = scalar_lea.vmem [#allocation2], %s352
        // Predicated region
        $region63: #{double_conv_right.6} parent=61 // pred_check
          %p354 = pneg %p51
        $region64: #{double_conv_right.6} parent=61 // pred_check_branch
          %356 = sbr.rel (%p354) target = $region66
        $region65: #{double_conv_right.6} parent=61 // pred_region
          _
        $region66: #{double_conv_right.6} parent=61 // pred_fallthru
          _
        %s357 = sand.u32 %s38, 1
        %s358 = sand.u32 %s38, 1
        %s359 = smul.addr %s358, 256
        %s360 = scalar_lea.vmem [#allocation2], %s359
        %p361 = pneg %p51
        %p362 = pneg %p48
        %p363 = pneg %p72
        %p364 = pneg %p69
        %p365 = pneg %p100
        %p366 = pneg %p97
        %s367 = smul.u32 2, %s21
        %p368 = scmp.lt.s32.totalorder %s20, 1
        %s369 = scalar_select %p368, %s20, 1
        %p370 = scmp.lt.s32.totalorder %s367, 3
        %s371 = scalar_select %p370, %s367, 3
        %s372 = smul.addr %s369, 4
        %s373 = sadd.s32 %s371, %s372
        %s374 = smul.addr %s373, 8
        %s375 = scalar_lea.vmem %s2, %s374
        %p376 = pneg %p126
        %p377 = pneg %p123
        %p378 = scmp.lt.s32.totalorder %s20, 1
        %s379 = scalar_select %p378, %s20, 1
        %s380 = smul.addr %s379, 8
        %s381 = scalar_lea.vmem %s3, %s380
        %p382 = pneg %p152
        %p383 = pneg %p149
        %p384 = scmp.lt.s32.totalorder %s20, 1
        %s385 = scalar_select %p384, %s20, 1
        %s386 = smul.addr %s385, 8
        %s387 = scalar_lea.vmem %s4, %s386
        %s388 = smul.u32 2, %s21
        %s389 = smul.u32 2, %s21
        %p390 = scmp.lt.s32.totalorder %s20, 1
        %s391 = scalar_select %p390, %s20, 1
        %p392 = scmp.lt.s32.totalorder %s389, 3
        %s393 = scalar_select %p392, %s389, 3
        %s394 = smul.addr %s391, 4
        %s395 = sadd.s32 %s393, %s394
        %s396 = smul.addr %s395, 8
        %s397 = scalar_lea.vmem %s2, %s396
        %s398 = smul.u32 2, %s21
        %p399 = scmp.lt.s32.totalorder %s20, 1
        %s400 = scalar_select %p399, %s20, 1
        %s401 = smul.addr %s400, 8
        %s402 = scalar_lea.vmem %s3, %s401
        %p403 = scmp.lt.s32.totalorder %s20, 1
        %s404 = scalar_select %p403, %s20, 1
        %s405 = smul.addr %s404, 8
        %s406 = scalar_lea.vmem %s4, %s405
        %v407 = vld [vmem:[%s1] sm:$0xff]
        %v408 = vld [vmem:[%s353] sm:$0xff]
        %v409 = vld [vmem:[%s353 + $0x8] sm:$0xff]
        %v410 = vld [vmem:[%s353 + $0x10] sm:$0xff]
        %v411 = vld [vmem:[%s353 + $0x18] sm:$0xff]
        %v412 = vld [vmem:[%s353 + $0x20] sm:$0xff]
        %v413 = vld [vmem:[%s353 + $0x28] sm:$0xff]
        %v414 = vld [vmem:[%s353 + $0x30] sm:$0xff]
        %v415 = vld [vmem:[%s353 + $0x38] sm:$0xff]
        %v416 = vld [vmem:[%s353 + $0x40] sm:$0xff]
        %v417 = vld [vmem:[%s353 + $0x48] sm:$0xff]
        %v418 = vld [vmem:[%s353 + $0x50] sm:$0xff]
        %v419 = vld [vmem:[%s353 + $0x58] sm:$0xff]
        %v420 = vld [vmem:[%s353 + $0x60] sm:$0xff]
        %v421 = vld [vmem:[%s353 + $0x68] sm:$0xff]
        %v422 = vld [vmem:[%s353 + $0x70] sm:$0xff]
        %v423 = vld [vmem:[%s353 + $0x78] sm:$0xff]
        %v424 = vld [vmem:[%s353 + $0x80] sm:$0xff]
        %v425 = vld [vmem:[%s353 + $0x88] sm:$0xff]
        %v426 = vld [vmem:[%s353 + $0x90] sm:$0xff]
        %v427 = vld [vmem:[%s353 + $0x98] sm:$0xff]
        %v428 = vld [vmem:[%s353 + $0xa0] sm:$0xff]
        %v429 = vld [vmem:[%s353 + $0xa8] sm:$0xff]
        %v430 = vld [vmem:[%s353 + $0xb0] sm:$0xff]
        %v431 = vld [vmem:[%s353 + $0xb8] sm:$0xff]
        %v432 = vld [vmem:[%s353 + $0xc0] sm:$0xff]
        %v433 = vld [vmem:[%s353 + $0xc8] sm:$0xff]
        %v434 = vld [vmem:[%s353 + $0xd0] sm:$0xff]
        %v435 = vld [vmem:[%s353 + $0xd8] sm:$0xff]
        %v436 = vld [vmem:[%s353 + $0xe0] sm:$0xff]
        %v437 = vld [vmem:[%s353 + $0xe8] sm:$0xff]
        %v438 = vld [vmem:[%s353 + $0xf0] sm:$0xff]
        %v439 = vld [vmem:[%s353 + $0xf8] sm:$0xff]
        %v441 = vunpack.c.l.b16 %v407
        %v442 = vunpack.c.h.b16 %v407
        %v443 = vpack.c.b16 %v441, %v441
        %v444 = vpack.c.b16 %v442, %v442
        %v479 = vunpack.c.l.b16 %v408
        %v480 = vunpack.c.h.b16 %v408
        %v481 = vunpack.c.l.b16 %v409
        %v482 = vunpack.c.h.b16 %v409
        %v483 = vunpack.c.l.b16 %v410
        %v484 = vunpack.c.h.b16 %v410
        %v485 = vunpack.c.l.b16 %v411
        %v486 = vunpack.c.h.b16 %v411
        %v487 = vunpack.c.l.b16 %v412
        %v488 = vunpack.c.h.b16 %v412
        %v489 = vunpack.c.l.b16 %v413
        %v490 = vunpack.c.h.b16 %v413
        %v491 = vunpack.c.l.b16 %v414
        %v492 = vunpack.c.h.b16 %v414
        %v493 = vunpack.c.l.b16 %v415
        %v494 = vunpack.c.h.b16 %v415
        %v495 = vunpack.c.l.b16 %v416
        %v496 = vunpack.c.h.b16 %v416
        %v497 = vunpack.c.l.b16 %v417
        %v498 = vunpack.c.h.b16 %v417
        %v499 = vunpack.c.l.b16 %v418
        %v500 = vunpack.c.h.b16 %v418
        %v501 = vunpack.c.l.b16 %v419
        %v502 = vunpack.c.h.b16 %v419
        %v503 = vunpack.c.l.b16 %v420
        %v504 = vunpack.c.h.b16 %v420
        %v505 = vunpack.c.l.b16 %v421
        %v506 = vunpack.c.h.b16 %v421
        %v507 = vunpack.c.l.b16 %v422
        %v508 = vunpack.c.h.b16 %v422
        %v509 = vunpack.c.l.b16 %v423
        %v510 = vunpack.c.h.b16 %v423
        %v511 = vunpack.c.l.b16 %v424
        %v512 = vunpack.c.h.b16 %v424
        %v513 = vunpack.c.l.b16 %v425
        %v514 = vunpack.c.h.b16 %v425
        %v515 = vunpack.c.l.b16 %v426
        %v516 = vunpack.c.h.b16 %v426
        %v517 = vunpack.c.l.b16 %v427
        %v518 = vunpack.c.h.b16 %v427
        %v519 = vunpack.c.l.b16 %v428
        %v520 = vunpack.c.h.b16 %v428
        %v521 = vunpack.c.l.b16 %v429
        %v522 = vunpack.c.h.b16 %v429
        %v523 = vunpack.c.l.b16 %v430
        %v524 = vunpack.c.h.b16 %v430
        %v525 = vunpack.c.l.b16 %v431
        %v526 = vunpack.c.h.b16 %v431
        %v527 = vunpack.c.l.b16 %v432
        %v528 = vunpack.c.h.b16 %v432
        %v529 = vunpack.c.l.b16 %v433
        %v530 = vunpack.c.h.b16 %v433
        %v531 = vunpack.c.l.b16 %v434
        %v532 = vunpack.c.h.b16 %v434
        %v533 = vunpack.c.l.b16 %v435
        %v534 = vunpack.c.h.b16 %v435
        %v535 = vunpack.c.l.b16 %v436
        %v536 = vunpack.c.h.b16 %v436
        %v537 = vunpack.c.l.b16 %v437
        %v538 = vunpack.c.h.b16 %v437
        %v539 = vunpack.c.l.b16 %v438
        %v540 = vunpack.c.h.b16 %v438
        %v541 = vunpack.c.l.b16 %v439
        %v542 = vunpack.c.h.b16 %v439
        %v543 = vpack.c.b16 %v481, %v479
        %v544 = vpack.c.b16 %v482, %v480
        %v545 = vpack.c.b16 %v485, %v483
        %v546 = vpack.c.b16 %v486, %v484
        %v547 = vpack.c.b16 %v489, %v487
        %v548 = vpack.c.b16 %v490, %v488
        %v549 = vpack.c.b16 %v493, %v491
        %v550 = vpack.c.b16 %v494, %v492
        %v551 = vpack.c.b16 %v497, %v495
        %v552 = vpack.c.b16 %v498, %v496
        %v553 = vpack.c.b16 %v501, %v499
        %v554 = vpack.c.b16 %v502, %v500
        %v555 = vpack.c.b16 %v505, %v503
        %v556 = vpack.c.b16 %v506, %v504
        %v557 = vpack.c.b16 %v509, %v507
        %v558 = vpack.c.b16 %v510, %v508
        %v559 = vpack.c.b16 %v513, %v511
        %v560 = vpack.c.b16 %v514, %v512
        %v561 = vpack.c.b16 %v517, %v515
        %v562 = vpack.c.b16 %v518, %v516
        %v563 = vpack.c.b16 %v521, %v519
        %v564 = vpack.c.b16 %v522, %v520
        %v565 = vpack.c.b16 %v525, %v523
        %v566 = vpack.c.b16 %v526, %v524
        %v567 = vpack.c.b16 %v529, %v527
        %v568 = vpack.c.b16 %v530, %v528
        %v569 = vpack.c.b16 %v533, %v531
        %v570 = vpack.c.b16 %v534, %v532
        %v571 = vpack.c.b16 %v537, %v535
        %v572 = vpack.c.b16 %v538, %v536
        %v573 = vpack.c.b16 %v541, %v539
        %v574 = vpack.c.b16 %v542, %v540
        %607 = vmatpush.bf16.msra.mxu0 %v557
        %608 = vmatpush.bf16.msra.mxu0 %v555
        %609 = vmatpush.bf16.msra.mxu0 %v553
        %610 = vmatpush.bf16.msra.mxu0 %v551
        %611 = vmatpush.bf16.msra.mxu0 %v549
        %612 = vmatpush.bf16.msra.mxu0 %v547
        %613 = vmatpush.bf16.msra.mxu0 %v545
        %614 = vmatpush.bf16.msra.mxu0 %v543
        %615 = vmatmul.bf16.gmra.mxu0 %v443
        %v616 = vpop.f32.mrf.mxu0
        %v617 = vadd.f32 0.0, %v616
        %v618 = vpop.f32.mrf.mxu0
        %619 = vdwg.mxu0
        %620 = vmatpush.bf16.msra.mxu0 %v573
        %621 = vmatpush.bf16.msra.mxu0 %v571
        %622 = vmatpush.bf16.msra.mxu0 %v569
        %623 = vmatpush.bf16.msra.mxu0 %v567
        %624 = vmatpush.bf16.msra.mxu0 %v565
        %625 = vmatpush.bf16.msra.mxu0 %v563
        %626 = vmatpush.bf16.msra.mxu0 %v561
        %627 = vmatpush.bf16.msra.mxu0 %v559
        %628 = vmatmul.bf16.gmra.mxu0 %v444
        %v629 = vpop.f32.mrf.mxu0
        %v630 = vadd.f32 %v617, %v629
        %v631 = vpop.f32.mrf.mxu0
        %632 = vdwg.mxu0
        %633 = vmatpush.bf16.msra.mxu0 %v558
        %634 = vmatpush.bf16.msra.mxu0 %v556
        %635 = vmatpush.bf16.msra.mxu0 %v554
        %636 = vmatpush.bf16.msra.mxu0 %v552
        %637 = vmatpush.bf16.msra.mxu0 %v550
        %638 = vmatpush.bf16.msra.mxu0 %v548
        %639 = vmatpush.bf16.msra.mxu0 %v546
        %640 = vmatpush.bf16.msra.mxu0 %v544
        %641 = vmatmul.bf16.gmra.mxu0 %v443
        %v642 = vpop.f32.mrf.mxu0
        %v643 = vadd.f32 0.0, %v642
        %v644 = vpop.f32.mrf.mxu0
        %645 = vdwg.mxu0
        %646 = vmatpush.bf16.msra.mxu0 %v574
        %647 = vmatpush.bf16.msra.mxu0 %v572
        %648 = vmatpush.bf16.msra.mxu0 %v570
        %649 = vmatpush.bf16.msra.mxu0 %v568
        %650 = vmatpush.bf16.msra.mxu0 %v566
        %651 = vmatpush.bf16.msra.mxu0 %v564
        %652 = vmatpush.bf16.msra.mxu0 %v562
        %653 = vmatpush.bf16.msra.mxu0 %v560
        %654 = vmatmul.bf16.gmra.mxu0 %v444
        %v655 = vpop.f32.mrf.mxu0
        %v656 = vadd.f32 %v643, %v655
        %v657 = vpop.f32.mrf.mxu0
        %658 = vdwg.mxu0
        %659 = vst [vmem:[%s397] sm:$0xff] %v630
        %660 = vst [vmem:[%s397 + $0x8] sm:$0xff] %v656
        %p661 = scmp.eq.s32.totalorder %s21, 0
        // Predicated region
        $region67: #{double_conv_right.6} parent=61 // pred_check
          %p662 = pneg %p661
        $region68: #{double_conv_right.6} parent=61 // pred_check_branch
          %664 = sbr.rel (%p662) target = $region70
        $region69: #{double_conv_right.6} parent=61 // pred_region
          %665 = vst [vmem:[%s402] sm:$0xff] 0.0
          %666 = vst [vmem:[%s406] sm:$0xff] 0.0
        $region70: #{double_conv_right.6} parent=61 // pred_fallthru
          _
        %v667 = vadd.f32 %v630, %v656
        %668 = vadd.xlane.f32.xlu0 %v667
        %v669 = vpop.xlane.xlu0 %668
        %v670 = vmul.f32 %v630, %v630
        %v671 = vmul.f32 %v656, %v656
        %v672 = vadd.f32 %v670, %v671
        %673 = vadd.xlane.f32.xlu0 %v672
        %v674 = vpop.xlane.xlu0 %673
        %v675 = vld [vmem:[%s402] sm:$0xff]
        %v676 = vadd.f32 %v675, %v669
        %677 = vst [vmem:[%s402] sm:$0xff] %v676
        %v678 = vld [vmem:[%s406] sm:$0xff]
        %v679 = vadd.f32 %v678, %v674
        %680 = vst [vmem:[%s406] sm:$0xff] %v679
        %s681 = smul.u32 2, %s21
        %p682 = scmp.lt.s32.totalorder %s20, 1
        %s683 = scalar_select %p682, %s20, 1
        %p684 = scmp.lt.s32.totalorder %s681, 3
        %s685 = scalar_select %p684, %s681, 3
        %s686 = smul.addr %s683, 4
        %s687 = sadd.s32 %s685, %s686
        %s688 = smul.addr %s687, 8
        %s689 = scalar_lea.vmem %s2, %s688
        %p690 = scmp.lt.s32.totalorder %s20, 1
        %s691 = scalar_select %p690, %s20, 1
        %s692 = smul.addr %s691, 8
        %s693 = scalar_lea.vmem %s3, %s692
        %p694 = scmp.lt.s32.totalorder %s20, 1
        %s695 = scalar_select %p694, %s20, 1
        %s696 = smul.addr %s695, 8
        %s697 = scalar_lea.vmem %s4, %s696
        // Predicated region
        $region71: #{double_conv_right.6} parent=61 // pred_check
          %p698 = pneg %p97
        $region72: #{double_conv_right.6} parent=61 // pred_check_branch
          %700 = sbr.rel (%p698) target = $region74
        $region73: #{double_conv_right.6} parent=61 // pred_region
          %s701 = smul.u32 2, %s21
        $region74: #{double_conv_right.6} parent=61 // pred_fallthru
          _
        // Predicated region
        $region75: #{double_conv_right.6} parent=61 // pred_check
          %p702 = pneg %p123
        $region76: #{double_conv_right.6} parent=61 // pred_check_branch
          %704 = sbr.rel (%p702) target = $region78
        $region77: #{double_conv_right.6} parent=61 // pred_region
          _
        $region78: #{double_conv_right.6} parent=61 // pred_fallthru
          _
        // Predicated region
        $region79: #{double_conv_right.6} parent=61 // pred_check
          %p705 = pneg %p149
        $region80: #{double_conv_right.6} parent=61 // pred_check_branch
          %707 = sbr.rel (%p705) target = $region82
        $region81: #{double_conv_right.6} parent=61 // pred_region
          _
        $region82: #{double_conv_right.6} parent=61 // pred_fallthru
          _
      $region62: #{double_conv_right.6} parent=5 // pred_fallthru
        _
      %p708 = scmp.le.s32.totalorder 2, %s11
      // Predicated region
      $region83: #{double_conv_right.6} parent=5 // pred_check
        %p709 = pneg %p708
      $region84: #{double_conv_right.6} parent=5 // pred_check_branch
        %711 = sbr.rel (%p709) target = $region86
      $region85: #{double_conv_right.6} parent=5 // pred_region
        %s712 = ssub.s32 %s11, 2
        // Predicated region
        $region87: #{double_conv_right.6} parent=85 // pred_check
          %p713 = pneg %p103
        $region88: #{double_conv_right.6} parent=85 // pred_check_branch
          %715 = sbr.rel (%p713) target = $region90
        $region89: #{double_conv_right.6} parent=85 // pred_region
          %s716 = smul.u32 2, %s23
          %p717 = scmp.lt.s32.totalorder %s22, 1
          %s718 = scalar_select %p717, %s22, 1
          %p719 = scmp.lt.s32.totalorder %s716, 3
          %s720 = scalar_select %p719, %s716, 3
          %s721 = smul.addr %s718, 4
          %s722 = sadd.s32 %s720, %s721
          %s723 = smul.addr %s722, 8
          %s724 = scalar_lea.vmem %s2, %s723
        $region90: #{double_conv_right.6} parent=85 // pred_fallthru
          _
        // Predicated region
        $region91: #{double_conv_right.6} parent=85 // pred_check
          %p725 = pneg %p129
        $region92: #{double_conv_right.6} parent=85 // pred_check_branch
          %727 = sbr.rel (%p725) target = $region94
        $region93: #{double_conv_right.6} parent=85 // pred_region
          %p728 = scmp.lt.s32.totalorder %s22, 1
          %s729 = scalar_select %p728, %s22, 1
          %s730 = smul.addr %s729, 8
          %s731 = scalar_lea.vmem %s3, %s730
        $region94: #{double_conv_right.6} parent=85 // pred_fallthru
          _
        // Predicated region
        $region95: #{double_conv_right.6} parent=85 // pred_check
          %p732 = pneg %p155
        $region96: #{double_conv_right.6} parent=85 // pred_check_branch
          %734 = sbr.rel (%p732) target = $region98
        $region97: #{double_conv_right.6} parent=85 // pred_region
          %p735 = scmp.lt.s32.totalorder %s22, 1
          %s736 = scalar_select %p735, %s22, 1
          %s737 = smul.addr %s736, 8
          %s738 = scalar_lea.vmem %s4, %s737
        $region98: #{double_conv_right.6} parent=85 // pred_fallthru
          _
      $region86: #{double_conv_right.6} parent=5 // pred_fallthru
        _
    $region6: #{double_conv_right.6} parent=1 // loop_footer
      %s15 = sadd.s32 1, %s11
    $region7: #{double_conv_right.6} parent=1 // loop_footer_branch
      %10 = sbr.rel target = $region3
    $region8: #{double_conv_right.6} parent=1 // loop_exit
      _

</llo_original>
